<compile_context>
chip_gen: v6e
topology: v6e:2x2x1
jax: 0.10.0
libtpu: 0.0.40
codegen_flags: <defaults>
</compile_context>

<pallas_src>
import functools
import math

import jax
import jax.numpy as jnp
from jax.experimental import pallas as pl
from jax.experimental.pallas import tpu as pltpu


# ----------------------------------------------------------------------------
# Separable sampling weights (plain JAX, tiny arrays — never touch features)
# ----------------------------------------------------------------------------
def _axis_weights(start, end, out_size, in_size, sampling_ratio, max_grid, order):
    """Per-axis RoIAlign sampling weights, shape (out_size, in_size)."""
    start = start.astype(jnp.float32)
    end = end.astype(jnp.float32)
    roi_size = jnp.maximum(end - start, 1.0)
    bin_size = roi_size / float(out_size)
    if sampling_ratio > 0:
        grid_f = jnp.float32(sampling_ratio)
    else:
        # Adaptive grid, clamped to the static max_grid.  When the true
        # adaptive grid <= max_grid this is exact; otherwise we average over
        # max_grid samples instead of silently under-weighting.
        grid_f = jnp.minimum(jnp.ceil(roi_size / float(out_size)),
                             jnp.float32(max_grid))

    p = jnp.arange(out_size, dtype=jnp.float32)[:, None]      # output bin index
    s = jnp.arange(max_grid, dtype=jnp.float32)[None, :]      # sample index
    x = start + p * bin_size + (s + 0.5) * bin_size / grid_f  # (out, max_grid)

    w_sample = (s < grid_f).astype(jnp.float32) / grid_f
    # Samples outside [-1, in_size] contribute zero (matches the CUDA kernel).
    w_sample = w_sample * ((x >= -1.0) & (x <= float(in_size))).astype(jnp.float32)

    xc = jnp.maximum(x, 0.0)
    x_low = jnp.floor(xc)
    at_end = x_low >= float(in_size - 1)
    x_low = jnp.where(at_end, float(in_size - 1), x_low)
    x_high = jnp.where(at_end, float(in_size - 1), x_low + 1.0)
    xe = jnp.where(at_end, x_low, xc)
    lx = xe - x_low
    hx = 1.0 - lx

    cols = jnp.arange(in_size, dtype=jnp.float32)
    if order == 1:
        contrib = (hx[..., None] * (x_low[..., None] == cols).astype(jnp.float32)
                   + lx[..., None] * (x_high[..., None] == cols).astype(jnp.float32))
    else:
        # TODO(synk): exact nearest-neighbor rounding convention of the CUDA
        # kernel (order=0) is unverified; round-half-up is used here.
        x_near = jnp.clip(jnp.floor(xc + 0.5), 0.0, float(in_size - 1))
        contrib = (x_near[..., None] == cols).astype(jnp.float32)

    return jnp.sum(w_sample[..., None] * contrib, axis=1)     # (out, in_size)


def _make_weights(rois, feat_shape, output_size, spatial_scale, sampling_ratio,
                  order, max_grid):
    _, _, D, H, W = feat_shape
    out_d, out_h, out_w = output_size
    batch_idx = rois[:, 0].astype(jnp.int32)
    s = jnp.float32(spatial_scale)
    # roi = (batch_index, x1, y1, z1, x2, y2, z2);  x<->W, y<->H, z<->D
    x1, y1, z1 = rois[:, 1] * s, rois[:, 2] * s, rois[:, 3] * s
    x2, y2, z2 = rois[:, 4] * s, rois[:, 5] * s, rois[:, 6] * s
    aw = functools.partial(_axis_weights, sampling_ratio=sampling_ratio,
                           max_grid=max_grid, order=order)
    wd = jax.vmap(lambda a, b: aw(a, b, out_size=out_d, in_size=D))(z1, z2)  # (n,P,D)
    wh = jax.vmap(lambda a, b: aw(a, b, out_size=out_h, in_size=H))(y1, y2)  # (n,Q,H)
    ww = jax.vmap(lambda a, b: aw(a, b, out_size=out_w, in_size=W))(x1, x2)  # (n,R,W)
    return batch_idx, wd, wh, ww


# ----------------------------------------------------------------------------
# Pallas kernel
# ----------------------------------------------------------------------------
def _roi_align_block_kernel(bidx_ref, feat_ref, whw_ref, wd_ref, out_ref,
                            hwred_ref, *, ch):
    # feat_ref  : (1, D, Ct, HW)    bf16 — channel tile of the block's batch slab
    # whw_ref   : (1, HW, NBp)      bf16 — fused H/W weights, lane-padded to 128k
    # wd_ref    : (1, P, D, NBp)    bf16 — depth weights (qr-broadcast columns)
    # out_ref   : (1, P, Ct, NBp)
    # hwred_ref : (D*Ct, NBp)       f32  — VMEM scratch for the MXU result
    del bidx_ref                      # only used by the index_maps (prefetch)
    depth = feat_ref.shape[1]
    tc = feat_ref.shape[2]
    hw = feat_ref.shape[3]
    out_d = out_ref.shape[1]

    # ONE lane-dense MXU matmul does the whole H*W reduction for every channel,
    # depth slice and packed RoI column of the block, accumulated in f32.
    feat = feat_ref[0].reshape(depth * tc, hw)          # rows ordered (d, c)
    hwred_ref[...] = jnp.dot(feat, whw_ref[0],
                             preferred_element_type=jnp.float32)

    wdall = wd_ref[0]                                   # (P, D, NBp), small

    # Depth contraction on the VPU: d is the OUTER loop, so each (chunk, NBp)
    # slab of hw_red is loaded from VMEM exactly once; the out_d accumulators
    # for a channel chunk stay in vregs (chunk size ch is register-budgeted),
    # and every multiply/add is a plain full-vreg op (no sublane reduce).
    c0 = 0
    while c0 < tc:                                      # static -> unrolled
        cur = min(ch, tc - c0)
        accs = [None] * out_d
        for d in range(depth):
            slab = hwred_ref[d * tc + c0:d * tc + c0 + cur, :]   # (cur, NBp)
            for p in range(out_d):
                w_row = wdall[p, d:d + 1, :].astype(jnp.float32)  # (1, NBp)
                term = slab * w_row
                accs[p] = term if d == 0 else accs[p] + term
        for p in range(out_d):
            out_ref[0, p, c0:c0 + cur, :] = accs[p].astype(out_ref.dtype)
        c0 += cur


# ----------------------------------------------------------------------------
# VMEM / register budgeting helpers (generation-aware)
# ----------------------------------------------------------------------------
def _vmem_capacity_bytes():
    try:
        info = pltpu.get_tpu_info()
        cap = int(getattr(info, "vmem_capacity_bytes", 0))
        if cap > 0:
            return cap
    except Exception:
        pass
    return 64 * 1024 * 1024        # conservative fallback: v7x per-core VMEM


def _block_residency_bytes(tc, D, hw, out_d, nb_pad, feat_bytes, out_bytes,
                           feat_buffers):
    feat_blk = feat_buffers * tc * D * hw * feat_bytes   # multi-buffered
    whw_blk = 2 * hw * nb_pad * feat_bytes               # double-buffered
    wd_blk = 2 * out_d * D * nb_pad * 2                  # bf16, double-buffered
    out_blk = 2 * out_d * tc * nb_pad * out_bytes        # double-buffered
    hwred = D * tc * nb_pad * 4                          # f32 scratch (single)
    return feat_blk + whw_blk + wd_blk + out_blk + hwred


def _pick_c_tile(C, D, hw, out_d, nb_pad, feat_bytes, out_bytes, feat_buffers,
                 budget_bytes):
    """Largest channel tile whose *total* per-step VMEM residency fits."""
    cands = sorted({C} | {t for t in range(8, C, 8) if C % t == 0})
    best = None
    for t in cands:                                     # ascending, monotone
        if _block_residency_bytes(t, D, hw, out_d, nb_pad, feat_bytes,
                                  out_bytes, feat_buffers) <= budget_bytes:
            best = t
    if best is None:
        best = cands[0]        # smallest tile; vmem_limit is raised to match
    return best


def _pick_chunk(tc, out_d, nb_pad, reg_budget_bytes=160 * 1024):
    """Channel chunk so out_d accumulators + one hw_red slab fit in vregs."""
    cap = reg_budget_bytes // max(1, (out_d + 1) * nb_pad * 4)
    cap = max(8, (cap // 8) * 8)
    return max(1, min(tc, cap))


# ----------------------------------------------------------------------------
# Wrapper
# ----------------------------------------------------------------------------
def roi_align_3d(features, rois, output_size, spatial_scale, sampling_ratio=-1,
                 order=1, max_grid=8, roi_block=None, c_tile=None,
                 feat_dtype=jnp.bfloat16, target_nb=256, feat_buffers=2,
                 interpret=False):
    """features: (N, C, D, H, W);  rois: (n, 7) -> (n, C, out_d, out_h, out_w)."""
    if isinstance(output_size, int):
        output_size = (output_size,) * 3
    N, C, D, H, W = features.shape
    out_d, out_h, out_w = output_size
    n = rois.shape[0]
    if n == 0:
        return jnp.zeros((0, C, out_d, out_h, out_w), features.dtype)
    if sampling_ratio > 0:
        max_grid = int(sampling_ratio)

    hw = H * W
    qr = out_h * out_w
    # Pack enough RoIs per block that NB = B_R*Q*R reaches target_nb (256
    # fills the 256-wide v6e/v7x MXU; v5e's 128-wide MXU just runs two passes),
    # then zero-pad NB to the next multiple of 128 so the MXU N dim, every
    # vreg and every output store is lane-dense for any output size.
    if roi_block is None:
        roi_block = max(1, -(-int(target_nb) // qr))
    b_r = int(roi_block)
    nb = b_r * qr
    nb_pad = -(-nb // 128) * 128

    batch_idx, wd, wh, ww = _make_weights(rois, features.shape, output_size,
                                          spatial_scale, sampling_ratio, order,
                                          max_grid)
    batch_idx = jnp.clip(batch_idx, 0, N - 1)   # guard out-of-range indices

    # --- group RoIs by batch & pad each group to a multiple of b_r ----------
    perm = jnp.argsort(batch_idx)
    sorted_b = batch_idx[perm]
    counts = jnp.bincount(batch_idx, length=N)                      # (N,)
    blocks_per_batch = (counts + b_r - 1) // b_r
    block_end = jnp.cumsum(blocks_per_batch)
    block_start = block_end - blocks_per_batch
    counts_before = jnp.cumsum(counts) - counts
    rank = jnp.arange(n, dtype=jnp.int32) - counts_before[sorted_b].astype(jnp.int32)
    slot_sorted = block_start[sorted_b].astype(jnp.int32) * b_r + rank
    slot_of = jnp.zeros((n,), jnp.int32).at[perm].set(slot_sorted)  # roi -> slot

    # Static upper bound on the number of RoI blocks (padding at batch edges).
    n_blocks = math.ceil(n / b_r) + min(N, n) - 1
    n_pad = n_blocks * b_r
    raw_bb = jnp.searchsorted(block_end, jnp.arange(n_blocks), side='right')
    # Unused trailing blocks reuse the last real batch -> no extra slab DMA.
    block_bidx = jnp.minimum(raw_bb, sorted_b[-1]).astype(jnp.int32)

    # --- per-RoI fused H/W weights & depth weights, scattered to padded slots
    whw = jnp.einsum('nqh,nrw->nhwqr', wh, ww).reshape(n, hw, qr)
    whw_pad = (jnp.zeros((n_pad, hw, qr), feat_dtype)
               .at[slot_of].set(whw.astype(feat_dtype)))
    whw_blk = (whw_pad.reshape(n_blocks, b_r, hw, qr)
               .transpose(0, 2, 1, 3).reshape(n_blocks, hw, nb))

    wd_pad = jnp.zeros((n_pad, out_d, D), jnp.float32).at[slot_of].set(wd)
    wd_t = wd_pad.reshape(n_blocks, b_r, out_d, D).transpose(0, 2, 3, 1)
    # TODO(synk): ship (n_blocks, P, D, b_r) and broadcast over the qr lane
    # groups in-kernel to drop the remaining qr-fold redundancy; bf16 already
    # halves this (minor) per-step weight stream.
    wd_blk = jnp.broadcast_to(
        wd_t[..., None], (n_blocks, out_d, D, b_r, qr)
    ).reshape(n_blocks, out_d, D, nb).astype(jnp.bfloat16)

    if nb_pad > nb:
        pad = nb_pad - nb
        whw_blk = jnp.pad(whw_blk, ((0, 0), (0, 0), (0, pad)))
        wd_blk = jnp.pad(wd_blk, ((0, 0), (0, 0), (0, 0), (0, pad)))

    # D-major feature layout: the kernel merges (D, Ct) rows for the MXU and
    # the depth contraction walks contiguous, sublane-aligned (chunk, NB) slabs.
    feat3 = (features.transpose(0, 2, 1, 3, 4)
             .reshape(N, D, C, hw).astype(feat_dtype))
    # TODO(synk): optional fp8 feature cast on v7x (accuracy-gated).

    feat_bytes = jnp.dtype(feat_dtype).itemsize
    out_bytes = jnp.dtype(features.dtype).itemsize
    cap = _vmem_capacity_bytes()
    if c_tile is None:
        c_tile = _pick_c_tile(C, D, hw, out_d, nb_pad, feat_bytes, out_bytes,
                              feat_buffers, budget_bytes=int(cap * 0.55))
    tc = int(c_tile)
    assert C % tc == 0 and (tc == C or tc % 8 == 0)
    n_ct = C // tc
    ch = _pick_chunk(tc, out_d, nb_pad)

    residency = _block_residency_bytes(tc, D, hw, out_d, nb_pad, feat_bytes,
                                       out_bytes, feat_buffers)
    vmem_limit = int(min(cap * 0.9, max(32 * 1024 * 1024, int(residency * 1.4))))

    feat_spec_kwargs = {}
    if feat_buffers and int(feat_buffers) != 2:
        # Optional deeper feature pipeline to hide batch-boundary slab DMAs.
        feat_spec_kwargs = dict(pipeline_mode=pl.Buffered(int(feat_buffers)))

    # Grid: channel tiles outermost, RoI blocks innermost -> for a fixed
    # channel tile, consecutive same-batch blocks keep the same feature block
    # index and Pallas skips re-issuing its DMA.  Channel axis "parallel" so
    # v7x's two TensorCores shard channels (feature HBM traffic stays 1x);
    # RoI-block axis "arbitrary" (sequential, slab reuse preserved).
    grid_spec = pltpu.PrefetchScalarGridSpec(
        num_scalar_prefetch=1,                     # block_bidx lands in SMEM
        grid=(n_ct, n_blocks),
        in_specs=[
            pl.BlockSpec((1, D, tc, hw),
                         lambda ci, i, bidx: (bidx[i], 0, ci, 0),
                         **feat_spec_kwargs),
            pl.BlockSpec((1, hw, nb_pad), lambda ci, i, bidx: (i, 0, 0)),
            pl.BlockSpec((1, out_d, D, nb_pad), lambda ci, i, bidx: (i, 0, 0, 0)),
        ],
        out_specs=pl.BlockSpec((1, out_d, tc, nb_pad),
                               lambda ci, i, bidx: (i, 0, ci, 0)),
        scratch_shapes=[pltpu.VMEM((D * tc, nb_pad), jnp.float32)],
    )

    flops = int(2 * n_blocks * C * D * hw * nb_pad
                + 2 * n_blocks * C * D * out_d * nb_pad)
    bytes_accessed = int(feat3.size * feat_bytes
                         + n_ct * (whw_blk.size * feat_bytes + wd_blk.size * 2)
                         + n_blocks * out_d * C * nb_pad * out_bytes)

    out = pl.pallas_call(
        functools.partial(_roi_align_block_kernel, ch=ch),
        grid_spec=grid_spec,
        out_shape=jax.ShapeDtypeStruct((n_blocks, out_d, C, nb_pad),
                                       features.dtype),
        compiler_params=pltpu.CompilerParams(
            dimension_semantics=("parallel", "arbitrary"),
            vmem_limit_bytes=vmem_limit),
        cost_estimate=pl.CostEstimate(flops=flops, transcendentals=0,
                                      bytes_accessed=bytes_accessed),
        interpret=interpret,
    )(block_bidx, feat3, whw_blk, wd_blk)

    # (n_blocks, P, C, NBp) -> (n, C, P, Q, R), undoing lane pad & block pack.
    out = out[..., :nb].reshape(n_blocks, out_d, C, b_r, qr)
    out = out.transpose(0, 3, 2, 1, 4).reshape(n_pad, C, out_d, qr)[slot_of]
    return out.reshape(n, C, out_d, out_h, out_w)


class RoIAlign:
    """JAX/Pallas counterpart of the PyTorch RoIAlign module (3D only).

    Forward only (inference kernel)."""
    # TODO(synk): backward (roi_align_3d_backward) is not implemented.

    def __init__(self, output_size, spatial_scale, sampling_ratio=-1):
        assert len(tuple(output_size)) == 3
        self.output_size = tuple(int(v) for v in output_size)
        self.spatial_scale = float(spatial_scale)
        self.sampling_ratio = int(sampling_ratio)

    def __call__(self, features, rois, order=1):
        assert order in (0, 1), 'only support order = 0 (nearest) or 1 (linear)'
        sampling_ratio = 1 if order == 0 else self.sampling_ratio
        return roi_align_3d(features, rois, self.output_size, self.spatial_scale,
                            sampling_ratio=sampling_ratio, order=order)


if __name__ == "__main__":
    key = jax.random.PRNGKey(0)
    N, C, D, H, W = 2, 4, 8, 16, 16
    features = jax.random.normal(key, (N, C, D, H, W), dtype=jnp.float32)
    # rois: (batch_index, x1, y1, z1, x2, y2, z2) in input-image coordinates
    rois = jnp.array([
        [0.0,  2.0,  3.0,  1.0, 20.0, 25.0, 10.0],
        [1.0,  0.0,  4.0,  2.0, 30.0, 31.0, 15.0],
        [0.0,  5.5,  6.0,  3.0, 12.0, 14.0,  9.0],
    ], dtype=jnp.float32)

    output_size = (4, 4, 4)
    spatial_scale = 0.5
    module = RoIAlign(output_size=output_size, spatial_scale=spatial_scale,
                      sampling_ratio=-1)
    out = module(features, rois, order=1)
    out = jax.block_until_ready(out)
    assert out.shape == (rois.shape[0], C, *output_size)

    # Pure-JAX reference using the same separable sampling weights (features
    # bf16-cast to match the kernel's MXU inputs; f32 weights / math).
    batch_idx, wd, wh, ww = _make_weights(rois, features.shape, output_size,
                                          spatial_scale, -1, 1, 8)
    feat_ref32 = features.astype(jnp.bfloat16).astype(jnp.float32)

    def _ref_one(b, wdi, whi, wwi):
        return jnp.einsum('cdhw,pd,qh,rw->cpqr', feat_ref32[b], wdi, whi, wwi,
                          precision='highest')

    ref = jax.vmap(_ref_one)(batch_idx, wd, wh, ww)
    assert jnp.allclose(out, ref, atol=2e-2, rtol=2e-2), "mismatch vs JAX reference"
    print("KERNEL_OK")
</pallas_src>

<mosaic_0001>
module attributes {stable_mosaic.version = 11 : i64} {
  func.func @_roi_align_block_kernel(%arg0: i32, %arg1: i32, %arg2: memref<2xi32, #tpu.memory_space<smem>>, %arg3: memref<1x8x4x256xbf16, #tpu.memory_space<vmem>>, %arg4: memref<1x256x256xbf16, #tpu.memory_space<vmem>>, %arg5: memref<1x4x8x256xbf16, #tpu.memory_space<vmem>>, %arg6: memref<1x4x4x256xf32, #tpu.memory_space<vmem>>, %arg7: memref<32x256xf32, #tpu.memory_space<vmem>>) attributes {dimension_semantics = [#tpu.dimension_semantics<parallel>, #tpu.dimension_semantics<arbitrary>], iteration_bounds = array<i64: 1, 2>, scalar_prefetch = 1 : i64, scratch_operands = 1 : i64, tpu.core_type = #tpu.core_type<tc>, window_params = [{transform_indices = @transform_0, window_bounds = array<i64: 1, 8, 4, 256>}, {transform_indices = @transform_1, window_bounds = array<i64: 1, 256, 256>}, {transform_indices = @transform_2, window_bounds = array<i64: 1, 4, 8, 256>}, {transform_indices = @transform_3, window_bounds = array<i64: 1, 4, 4, 256>}]} {
    %c0 = arith.constant 0 : index
    %c0_0 = arith.constant 0 : index
    %c0_1 = arith.constant 0 : index
    %c0_2 = arith.constant 0 : index
    %0 = vector.load %arg3[%c0, %c0_0, %c0_1, %c0_2] : memref<1x8x4x256xbf16, #tpu.memory_space<vmem>>, vector<1x8x4x256xbf16>
    %1 = vector.shape_cast %0 : vector<1x8x4x256xbf16> to vector<8x4x256xbf16>
    %2 = vector.shape_cast %1 : vector<8x4x256xbf16> to vector<32x256xbf16>
    %c0_3 = arith.constant 0 : index
    %c0_4 = arith.constant 0 : index
    %c0_5 = arith.constant 0 : index
    %3 = vector.load %arg4[%c0_3, %c0_4, %c0_5] : memref<1x256x256xbf16, #tpu.memory_space<vmem>>, vector<1x256x256xbf16>
    %4 = vector.shape_cast %3 : vector<1x256x256xbf16> to vector<256x256xbf16>
    %cst = arith.constant dense<0.000000e+00> : vector<32x256xf32>
    %5 = tpu.matmul %2, %4, %cst {dimension_numbers = #tpu.dot_dimension_numbers<[1], [0], [0], [1], [0, 0, 1, 1], [], []>} : vector<32x256xbf16>, vector<256x256xbf16>, vector<32x256xf32> -> vector<32x256xf32>
    %c0_6 = arith.constant 0 : index
    %c0_7 = arith.constant 0 : index
    %6 = vector.load %arg7[%c0_6, %c0_7] : memref<32x256xf32, #tpu.memory_space<vmem>>, vector<32x256xf32>
    tpu.vector_store %arg7[%c0_6, %c0_7], %5 {strides = array<i32>} : memref<32x256xf32, #tpu.memory_space<vmem>>, vector<32x256xf32>,
    %c0_8 = arith.constant 0 : index
    %c0_9 = arith.constant 0 : index
    %c0_10 = arith.constant 0 : index
    %c0_11 = arith.constant 0 : index
    %7 = vector.load %arg5[%c0_8, %c0_9, %c0_10, %c0_11] : memref<1x4x8x256xbf16, #tpu.memory_space<vmem>>, vector<1x4x8x256xbf16>
    %8 = vector.shape_cast %7 : vector<1x4x8x256xbf16> to vector<4x8x256xbf16>
    %c0_12 = arith.constant 0 : index
    %c0_13 = arith.constant 0 : index
    %9 = vector.load %arg7[%c0_12, %c0_13] : memref<32x256xf32, #tpu.memory_space<vmem>>, vector<4x256xf32>
    %10 = vector.extract_strided_slice %8 {offsets = [0, 0, 0], sizes = [1, 1, 256], strides = [1, 1, 1]} : vector<4x8x256xbf16> to vector<1x1x256xbf16>
    %11 = vector.shape_cast %10 : vector<1x1x256xbf16> to vector<1x256xbf16>
    %12 = arith.extf %11 : vector<1x256xbf16> to vector<1x256xf32>
    %13 = vector.broadcast %12 : vector<1x256xf32> to vector<4x256xf32>
    %14 = arith.mulf %9, %13 : vector<4x256xf32>
    %15 = vector.extract_strided_slice %8 {offsets = [1, 0, 0], sizes = [1, 1, 256], strides = [1, 1, 1]} : vector<4x8x256xbf16> to vector<1x1x256xbf16>
    %16 = vector.shape_cast %15 : vector<1x1x256xbf16> to vector<1x256xbf16>
    %17 = arith.extf %16 : vector<1x256xbf16> to vector<1x256xf32>
    %18 = vector.broadcast %17 : vector<1x256xf32> to vector<4x256xf32>
    %19 = arith.mulf %9, %18 : vector<4x256xf32>
    %20 = vector.extract_strided_slice %8 {offsets = [2, 0, 0], sizes = [1, 1, 256], strides = [1, 1, 1]} : vector<4x8x256xbf16> to vector<1x1x256xbf16>
    %21 = vector.shape_cast %20 : vector<1x1x256xbf16> to vector<1x256xbf16>
    %22 = arith.extf %21 : vector<1x256xbf16> to vector<1x256xf32>
    %23 = vector.broadcast %22 : vector<1x256xf32> to vector<4x256xf32>
    %24 = arith.mulf %9, %23 : vector<4x256xf32>
    %25 = vector.extract_strided_slice %8 {offsets = [3, 0, 0], sizes = [1, 1, 256], strides = [1, 1, 1]} : vector<4x8x256xbf16> to vector<1x1x256xbf16>
    %26 = vector.shape_cast %25 : vector<1x1x256xbf16> to vector<1x256xbf16>
    %27 = arith.extf %26 : vector<1x256xbf16> to vector<1x256xf32>
    %28 = vector.broadcast %27 : vector<1x256xf32> to vector<4x256xf32>
    %29 = arith.mulf %9, %28 : vector<4x256xf32>
    %c4 = arith.constant 4 : index
    %c0_14 = arith.constant 0 : index
    %30 = vector.load %arg7[%c4, %c0_14] : memref<32x256xf32, #tpu.memory_space<vmem>>, vector<4x256xf32>
    %31 = vector.extract_strided_slice %8 {offsets = [0, 1, 0], sizes = [1, 1, 256], strides = [1, 1, 1]} : vector<4x8x256xbf16> to vector<1x1x256xbf16>
    %32 = vector.shape_cast %31 : vector<1x1x256xbf16> to vector<1x256xbf16>
    %33 = arith.extf %32 : vector<1x256xbf16> to vector<1x256xf32>
    %34 = vector.broadcast %33 : vector<1x256xf32> to vector<4x256xf32>
    %35 = arith.mulf %30, %34 : vector<4x256xf32>
    %36 = arith.addf %14, %35 : vector<4x256xf32>
    %37 = vector.extract_strided_slice %8 {offsets = [1, 1, 0], sizes = [1, 1, 256], strides = [1, 1, 1]} : vector<4x8x256xbf16> to vector<1x1x256xbf16>
    %38 = vector.shape_cast %37 : vector<1x1x256xbf16> to vector<1x256xbf16>
    %39 = arith.extf %38 : vector<1x256xbf16> to vector<1x256xf32>
    %40 = vector.broadcast %39 : vector<1x256xf32> to vector<4x256xf32>
    %41 = arith.mulf %30, %40 : vector<4x256xf32>
    %42 = arith.addf %19, %41 : vector<4x256xf32>
    %43 = vector.extract_strided_slice %8 {offsets = [2, 1, 0], sizes = [1, 1, 256], strides = [1, 1, 1]} : vector<4x8x256xbf16> to vector<1x1x256xbf16>
    %44 = vector.shape_cast %43 : vector<1x1x256xbf16> to vector<1x256xbf16>
    %45 = arith.extf %44 : vector<1x256xbf16> to vector<1x256xf32>
    %46 = vector.broadcast %45 : vector<1x256xf32> to vector<4x256xf32>
    %47 = arith.mulf %30, %46 : vector<4x256xf32>
    %48 = arith.addf %24, %47 : vector<4x256xf32>
    %49 = vector.extract_strided_slice %8 {offsets = [3, 1, 0], sizes = [1, 1, 256], strides = [1, 1, 1]} : vector<4x8x256xbf16> to vector<1x1x256xbf16>
    %50 = vector.shape_cast %49 : vector<1x1x256xbf16> to vector<1x256xbf16>
    %51 = arith.extf %50 : vector<1x256xbf16> to vector<1x256xf32>
    %52 = vector.broadcast %51 : vector<1x256xf32> to vector<4x256xf32>
    %53 = arith.mulf %30, %52 : vector<4x256xf32>
    %54 = arith.addf %29, %53 : vector<4x256xf32>
    %c8 = arith.constant 8 : index
    %c0_15 = arith.constant 0 : index
    %55 = vector.load %arg7[%c8, %c0_15] : memref<32x256xf32, #tpu.memory_space<vmem>>, vector<4x256xf32>
    %56 = vector.extract_strided_slice %8 {offsets = [0, 2, 0], sizes = [1, 1, 256], strides = [1, 1, 1]} : vector<4x8x256xbf16> to vector<1x1x256xbf16>
    %57 = vector.shape_cast %56 : vector<1x1x256xbf16> to vector<1x256xbf16>
    %58 = arith.extf %57 : vector<1x256xbf16> to vector<1x256xf32>
    %59 = vector.broadcast %58 : vector<1x256xf32> to vector<4x256xf32>
    %60 = arith.mulf %55, %59 : vector<4x256xf32>
    %61 = arith.addf %36, %60 : vector<4x256xf32>
    %62 = vector.extract_strided_slice %8 {offsets = [1, 2, 0], sizes = [1, 1, 256], strides = [1, 1, 1]} : vector<4x8x256xbf16> to vector<1x1x256xbf16>
    %63 = vector.shape_cast %62 : vector<1x1x256xbf16> to vector<1x256xbf16>
    %64 = arith.extf %63 : vector<1x256xbf16> to vector<1x256xf32>
    %65 = vector.broadcast %64 : vector<1x256xf32> to vector<4x256xf32>
    %66 = arith.mulf %55, %65 : vector<4x256xf32>
    %67 = arith.addf %42, %66 : vector<4x256xf32>
    %68 = vector.extract_strided_slice %8 {offsets = [2, 2, 0], sizes = [1, 1, 256], strides = [1, 1, 1]} : vector<4x8x256xbf16> to vector<1x1x256xbf16>
    %69 = vector.shape_cast %68 : vector<1x1x256xbf16> to vector<1x256xbf16>
    %70 = arith.extf %69 : vector<1x256xbf16> to vector<1x256xf32>
    %71 = vector.broadcast %70 : vector<1x256xf32> to vector<4x256xf32>
    %72 = arith.mulf %55, %71 : vector<4x256xf32>
    %73 = arith.addf %48, %72 : vector<4x256xf32>
    %74 = vector.extract_strided_slice %8 {offsets = [3, 2, 0], sizes = [1, 1, 256], strides = [1, 1, 1]} : vector<4x8x256xbf16> to vector<1x1x256xbf16>
    %75 = vector.shape_cast %74 : vector<1x1x256xbf16> to vector<1x256xbf16>
    %76 = arith.extf %75 : vector<1x256xbf16> to vector<1x256xf32>
    %77 = vector.broadcast %76 : vector<1x256xf32> to vector<4x256xf32>
    %78 = arith.mulf %55, %77 : vector<4x256xf32>
    %79 = arith.addf %54, %78 : vector<4x256xf32>
    %c12 = arith.constant 12 : index
    %c0_16 = arith.constant 0 : index
    %80 = vector.load %arg7[%c12, %c0_16] : memref<32x256xf32, #tpu.memory_space<vmem>>, vector<4x256xf32>
    %81 = vector.extract_strided_slice %8 {offsets = [0, 3, 0], sizes = [1, 1, 256], strides = [1, 1, 1]} : vector<4x8x256xbf16> to vector<1x1x256xbf16>
    %82 = vector.shape_cast %81 : vector<1x1x256xbf16> to vector<1x256xbf16>
    %83 = arith.extf %82 : vector<1x256xbf16> to vector<1x256xf32>
    %84 = vector.broadcast %83 : vector<1x256xf32> to vector<4x256xf32>
    %85 = arith.mulf %80, %84 : vector<4x256xf32>
    %86 = arith.addf %61, %85 : vector<4x256xf32>
    %87 = vector.extract_strided_slice %8 {offsets = [1, 3, 0], sizes = [1, 1, 256], strides = [1, 1, 1]} : vector<4x8x256xbf16> to vector<1x1x256xbf16>
    %88 = vector.shape_cast %87 : vector<1x1x256xbf16> to vector<1x256xbf16>
    %89 = arith.extf %88 : vector<1x256xbf16> to vector<1x256xf32>
    %90 = vector.broadcast %89 : vector<1x256xf32> to vector<4x256xf32>
    %91 = arith.mulf %80, %90 : vector<4x256xf32>
    %92 = arith.addf %67, %91 : vector<4x256xf32>
    %93 = vector.extract_strided_slice %8 {offsets = [2, 3, 0], sizes = [1, 1, 256], strides = [1, 1, 1]} : vector<4x8x256xbf16> to vector<1x1x256xbf16>
    %94 = vector.shape_cast %93 : vector<1x1x256xbf16> to vector<1x256xbf16>
    %95 = arith.extf %94 : vector<1x256xbf16> to vector<1x256xf32>
    %96 = vector.broadcast %95 : vector<1x256xf32> to vector<4x256xf32>
    %97 = arith.mulf %80, %96 : vector<4x256xf32>
    %98 = arith.addf %73, %97 : vector<4x256xf32>
    %99 = vector.extract_strided_slice %8 {offsets = [3, 3, 0], sizes = [1, 1, 256], strides = [1, 1, 1]} : vector<4x8x256xbf16> to vector<1x1x256xbf16>
    %100 = vector.shape_cast %99 : vector<1x1x256xbf16> to vector<1x256xbf16>
    %101 = arith.extf %100 : vector<1x256xbf16> to vector<1x256xf32>
    %102 = vector.broadcast %101 : vector<1x256xf32> to vector<4x256xf32>
    %103 = arith.mulf %80, %102 : vector<4x256xf32>
    %104 = arith.addf %79, %103 : vector<4x256xf32>
    %c16 = arith.constant 16 : index
    %c0_17 = arith.constant 0 : index
    %105 = vector.load %arg7[%c16, %c0_17] : memref<32x256xf32, #tpu.memory_space<vmem>>, vector<4x256xf32>
    %106 = vector.extract_strided_slice %8 {offsets = [0, 4, 0], sizes = [1, 1, 256], strides = [1, 1, 1]} : vector<4x8x256xbf16> to vector<1x1x256xbf16>
    %107 = vector.shape_cast %106 : vector<1x1x256xbf16> to vector<1x256xbf16>
    %108 = arith.extf %107 : vector<1x256xbf16> to vector<1x256xf32>
    %109 = vector.broadcast %108 : vector<1x256xf32> to vector<4x256xf32>
    %110 = arith.mulf %105, %109 : vector<4x256xf32>
    %111 = arith.addf %86, %110 : vector<4x256xf32>
    %112 = vector.extract_strided_slice %8 {offsets = [1, 4, 0], sizes = [1, 1, 256], strides = [1, 1, 1]} : vector<4x8x256xbf16> to vector<1x1x256xbf16>
    %113 = vector.shape_cast %112 : vector<1x1x256xbf16> to vector<1x256xbf16>
    %114 = arith.extf %113 : vector<1x256xbf16> to vector<1x256xf32>
    %115 = vector.broadcast %114 : vector<1x256xf32> to vector<4x256xf32>
    %116 = arith.mulf %105, %115 : vector<4x256xf32>
    %117 = arith.addf %92, %116 : vector<4x256xf32>
    %118 = vector.extract_strided_slice %8 {offsets = [2, 4, 0], sizes = [1, 1, 256], strides = [1, 1, 1]} : vector<4x8x256xbf16> to vector<1x1x256xbf16>
    %119 = vector.shape_cast %118 : vector<1x1x256xbf16> to vector<1x256xbf16>
    %120 = arith.extf %119 : vector<1x256xbf16> to vector<1x256xf32>
    %121 = vector.broadcast %120 : vector<1x256xf32> to vector<4x256xf32>
    %122 = arith.mulf %105, %121 : vector<4x256xf32>
    %123 = arith.addf %98, %122 : vector<4x256xf32>
    %124 = vector.extract_strided_slice %8 {offsets = [3, 4, 0], sizes = [1, 1, 256], strides = [1, 1, 1]} : vector<4x8x256xbf16> to vector<1x1x256xbf16>
    %125 = vector.shape_cast %124 : vector<1x1x256xbf16> to vector<1x256xbf16>
    %126 = arith.extf %125 : vector<1x256xbf16> to vector<1x256xf32>
    %127 = vector.broadcast %126 : vector<1x256xf32> to vector<4x256xf32>
    %128 = arith.mulf %105, %127 : vector<4x256xf32>
    %129 = arith.addf %104, %128 : vector<4x256xf32>
    %c20 = arith.constant 20 : index
    %c0_18 = arith.constant 0 : index
    %130 = vector.load %arg7[%c20, %c0_18] : memref<32x256xf32, #tpu.memory_space<vmem>>, vector<4x256xf32>
    %131 = vector.extract_strided_slice %8 {offsets = [0, 5, 0], sizes = [1, 1, 256], strides = [1, 1, 1]} : vector<4x8x256xbf16> to vector<1x1x256xbf16>
    %132 = vector.shape_cast %131 : vector<1x1x256xbf16> to vector<1x256xbf16>
    %133 = arith.extf %132 : vector<1x256xbf16> to vector<1x256xf32>
    %134 = vector.broadcast %133 : vector<1x256xf32> to vector<4x256xf32>
    %135 = arith.mulf %130, %134 : vector<4x256xf32>
    %136 = arith.addf %111, %135 : vector<4x256xf32>
    %137 = vector.extract_strided_slice %8 {offsets = [1, 5, 0], sizes = [1, 1, 256], strides = [1, 1, 1]} : vector<4x8x256xbf16> to vector<1x1x256xbf16>
    %138 = vector.shape_cast %137 : vector<1x1x256xbf16> to vector<1x256xbf16>
    %139 = arith.extf %138 : vector<1x256xbf16> to vector<1x256xf32>
    %140 = vector.broadcast %139 : vector<1x256xf32> to vector<4x256xf32>
    %141 = arith.mulf %130, %140 : vector<4x256xf32>
    %142 = arith.addf %117, %141 : vector<4x256xf32>
    %143 = vector.extract_strided_slice %8 {offsets = [2, 5, 0], sizes = [1, 1, 256], strides = [1, 1, 1]} : vector<4x8x256xbf16> to vector<1x1x256xbf16>
    %144 = vector.shape_cast %143 : vector<1x1x256xbf16> to vector<1x256xbf16>
    %145 = arith.extf %144 : vector<1x256xbf16> to vector<1x256xf32>
    %146 = vector.broadcast %145 : vector<1x256xf32> to vector<4x256xf32>
    %147 = arith.mulf %130, %146 : vector<4x256xf32>
    %148 = arith.addf %123, %147 : vector<4x256xf32>
    %149 = vector.extract_strided_slice %8 {offsets = [3, 5, 0], sizes = [1, 1, 256], strides = [1, 1, 1]} : vector<4x8x256xbf16> to vector<1x1x256xbf16>
    %150 = vector.shape_cast %149 : vector<1x1x256xbf16> to vector<1x256xbf16>
    %151 = arith.extf %150 : vector<1x256xbf16> to vector<1x256xf32>
    %152 = vector.broadcast %151 : vector<1x256xf32> to vector<4x256xf32>
    %153 = arith.mulf %130, %152 : vector<4x256xf32>
    %154 = arith.addf %129, %153 : vector<4x256xf32>
    %c24 = arith.constant 24 : index
    %c0_19 = arith.constant 0 : index
    %155 = vector.load %arg7[%c24, %c0_19] : memref<32x256xf32, #tpu.memory_space<vmem>>, vector<4x256xf32>
    %156 = vector.extract_strided_slice %8 {offsets = [0, 6, 0], sizes = [1, 1, 256], strides = [1, 1, 1]} : vector<4x8x256xbf16> to vector<1x1x256xbf16>
    %157 = vector.shape_cast %156 : vector<1x1x256xbf16> to vector<1x256xbf16>
    %158 = arith.extf %157 : vector<1x256xbf16> to vector<1x256xf32>
    %159 = vector.broadcast %158 : vector<1x256xf32> to vector<4x256xf32>
    %160 = arith.mulf %155, %159 : vector<4x256xf32>
    %161 = arith.addf %136, %160 : vector<4x256xf32>
    %162 = vector.extract_strided_slice %8 {offsets = [1, 6, 0], sizes = [1, 1, 256], strides = [1, 1, 1]} : vector<4x8x256xbf16> to vector<1x1x256xbf16>
    %163 = vector.shape_cast %162 : vector<1x1x256xbf16> to vector<1x256xbf16>
    %164 = arith.extf %163 : vector<1x256xbf16> to vector<1x256xf32>
    %165 = vector.broadcast %164 : vector<1x256xf32> to vector<4x256xf32>
    %166 = arith.mulf %155, %165 : vector<4x256xf32>
    %167 = arith.addf %142, %166 : vector<4x256xf32>
    %168 = vector.extract_strided_slice %8 {offsets = [2, 6, 0], sizes = [1, 1, 256], strides = [1, 1, 1]} : vector<4x8x256xbf16> to vector<1x1x256xbf16>
    %169 = vector.shape_cast %168 : vector<1x1x256xbf16> to vector<1x256xbf16>
    %170 = arith.extf %169 : vector<1x256xbf16> to vector<1x256xf32>
    %171 = vector.broadcast %170 : vector<1x256xf32> to vector<4x256xf32>
    %172 = arith.mulf %155, %171 : vector<4x256xf32>
    %173 = arith.addf %148, %172 : vector<4x256xf32>
    %174 = vector.extract_strided_slice %8 {offsets = [3, 6, 0], sizes = [1, 1, 256], strides = [1, 1, 1]} : vector<4x8x256xbf16> to vector<1x1x256xbf16>
    %175 = vector.shape_cast %174 : vector<1x1x256xbf16> to vector<1x256xbf16>
    %176 = arith.extf %175 : vector<1x256xbf16> to vector<1x256xf32>
    %177 = vector.broadcast %176 : vector<1x256xf32> to vector<4x256xf32>
    %178 = arith.mulf %155, %177 : vector<4x256xf32>
    %179 = arith.addf %154, %178 : vector<4x256xf32>
    %c28 = arith.constant 28 : index
    %c0_20 = arith.constant 0 : index
    %180 = vector.load %arg7[%c28, %c0_20] : memref<32x256xf32, #tpu.memory_space<vmem>>, vector<4x256xf32>
    %181 = vector.extract_strided_slice %8 {offsets = [0, 7, 0], sizes = [1, 1, 256], strides = [1, 1, 1]} : vector<4x8x256xbf16> to vector<1x1x256xbf16>
    %182 = vector.shape_cast %181 : vector<1x1x256xbf16> to vector<1x256xbf16>
    %183 = arith.extf %182 : vector<1x256xbf16> to vector<1x256xf32>
    %184 = vector.broadcast %183 : vector<1x256xf32> to vector<4x256xf32>
    %185 = arith.mulf %180, %184 : vector<4x256xf32>
    %186 = arith.addf %161, %185 : vector<4x256xf32>
    %187 = vector.extract_strided_slice %8 {offsets = [1, 7, 0], sizes = [1, 1, 256], strides = [1, 1, 1]} : vector<4x8x256xbf16> to vector<1x1x256xbf16>
    %188 = vector.shape_cast %187 : vector<1x1x256xbf16> to vector<1x256xbf16>
    %189 = arith.extf %188 : vector<1x256xbf16> to vector<1x256xf32>
    %190 = vector.broadcast %189 : vector<1x256xf32> to vector<4x256xf32>
    %191 = arith.mulf %180, %190 : vector<4x256xf32>
    %192 = arith.addf %167, %191 : vector<4x256xf32>
    %193 = vector.extract_strided_slice %8 {offsets = [2, 7, 0], sizes = [1, 1, 256], strides = [1, 1, 1]} : vector<4x8x256xbf16> to vector<1x1x256xbf16>
    %194 = vector.shape_cast %193 : vector<1x1x256xbf16> to vector<1x256xbf16>
    %195 = arith.extf %194 : vector<1x256xbf16> to vector<1x256xf32>
    %196 = vector.broadcast %195 : vector<1x256xf32> to vector<4x256xf32>
    %197 = arith.mulf %180, %196 : vector<4x256xf32>
    %198 = arith.addf %173, %197 : vector<4x256xf32>
    %199 = vector.extract_strided_slice %8 {offsets = [3, 7, 0], sizes = [1, 1, 256], strides = [1, 1, 1]} : vector<4x8x256xbf16> to vector<1x1x256xbf16>
    %200 = vector.shape_cast %199 : vector<1x1x256xbf16> to vector<1x256xbf16>
    %201 = arith.extf %200 : vector<1x256xbf16> to vector<1x256xf32>
    %202 = vector.broadcast %201 : vector<1x256xf32> to vector<4x256xf32>
    %203 = arith.mulf %180, %202 : vector<4x256xf32>
    %204 = arith.addf %179, %203 : vector<4x256xf32>
    %c0_21 = arith.constant 0 : index
    %c0_22 = arith.constant 0 : index
    %c0_23 = arith.constant 0 : index
    %c0_24 = arith.constant 0 : index
    %205 = vector.load %arg6[%c0_21, %c0_22, %c0_23, %c0_24] : memref<1x4x4x256xf32, #tpu.memory_space<vmem>>, vector<1x1x4x256xf32>
    %206 = vector.shape_cast %205 : vector<1x1x4x256xf32> to vector<4x256xf32>
    %207 = vector.shape_cast %186 : vector<4x256xf32> to vector<1x1x4x256xf32>
    tpu.vector_store %arg6[%c0_21, %c0_22, %c0_23, %c0_24], %207 {strides = array<i32>} : memref<1x4x4x256xf32, #tpu.memory_space<vmem>>, vector<1x1x4x256xf32>,
    %c0_25 = arith.constant 0 : index
    %c1 = arith.constant 1 : index
    %c0_26 = arith.constant 0 : index
    %c0_27 = arith.constant 0 : index
    %208 = vector.load %arg6[%c0_25, %c1, %c0_26, %c0_27] : memref<1x4x4x256xf32, #tpu.memory_space<vmem>>, vector<1x1x4x256xf32>
    %209 = vector.shape_cast %208 : vector<1x1x4x256xf32> to vector<4x256xf32>
    %210 = vector.shape_cast %192 : vector<4x256xf32> to vector<1x1x4x256xf32>
    tpu.vector_store %arg6[%c0_25, %c1, %c0_26, %c0_27], %210 {strides = array<i32>} : memref<1x4x4x256xf32, #tpu.memory_space<vmem>>, vector<1x1x4x256xf32>,
    %c0_28 = arith.constant 0 : index
    %c2 = arith.constant 2 : index
    %c0_29 = arith.constant 0 : index
    %c0_30 = arith.constant 0 : index
    %211 = vector.load %arg6[%c0_28, %c2, %c0_29, %c0_30] : memref<1x4x4x256xf32, #tpu.memory_space<vmem>>, vector<1x1x4x256xf32>
    %212 = vector.shape_cast %211 : vector<1x1x4x256xf32> to vector<4x256xf32>
    %213 = vector.shape_cast %198 : vector<4x256xf32> to vector<1x1x4x256xf32>
    tpu.vector_store %arg6[%c0_28, %c2, %c0_29, %c0_30], %213 {strides = array<i32>} : memref<1x4x4x256xf32, #tpu.memory_space<vmem>>, vector<1x1x4x256xf32>,
    %c0_31 = arith.constant 0 : index
    %c3 = arith.constant 3 : index
    %c0_32 = arith.constant 0 : index
    %c0_33 = arith.constant 0 : index
    %214 = vector.load %arg6[%c0_31, %c3, %c0_32, %c0_33] : memref<1x4x4x256xf32, #tpu.memory_space<vmem>>, vector<1x1x4x256xf32>
    %215 = vector.shape_cast %214 : vector<1x1x4x256xf32> to vector<4x256xf32>
    %216 = vector.shape_cast %204 : vector<4x256xf32> to vector<1x1x4x256xf32>
    tpu.vector_store %arg6[%c0_31, %c3, %c0_32, %c0_33], %216 {strides = array<i32>} : memref<1x4x4x256xf32, #tpu.memory_space<vmem>>, vector<1x1x4x256xf32>,
    return
  }
  func.func @transform_0(%arg0: i32, %arg1: i32, %arg2: memref<2xi32, #tpu.memory_space<smem>>) -> (i32, i32, i32, i32) {
    %0 = arith.index_cast %arg1 : i32 to index
    %1 = memref.load %arg2[%0] : memref<2xi32, #tpu.memory_space<smem>>
    %c0_i32 = arith.constant 0 : i32
    %c0_i32_0 = arith.constant 0 : i32
    %c0_i32_1 = arith.constant 0 : i32
    return %1, %c0_i32, %arg0, %c0_i32_0 : i32, i32, i32, i32
  }
  func.func @transform_1(%arg0: i32, %arg1: i32, %arg2: memref<2xi32, #tpu.memory_space<smem>>) -> (i32, i32, i32) {
    %c0_i32 = arith.constant 0 : i32
    %c0_i32_0 = arith.constant 0 : i32
    %c0_i32_1 = arith.constant 0 : i32
    return %arg1, %c0_i32, %c0_i32_0 : i32, i32, i32
  }
  func.func @transform_2(%arg0: i32, %arg1: i32, %arg2: memref<2xi32, #tpu.memory_space<smem>>) -> (i32, i32, i32, i32) {
    %c0_i32 = arith.constant 0 : i32
    %c0_i32_0 = arith.constant 0 : i32
    %c0_i32_1 = arith.constant 0 : i32
    %c0_i32_2 = arith.constant 0 : i32
    return %arg1, %c0_i32, %c0_i32_0, %c0_i32_1 : i32, i32, i32, i32
  }
  func.func @transform_3(%arg0: i32, %arg1: i32, %arg2: memref<2xi32, #tpu.memory_space<smem>>) -> (i32, i32, i32, i32) {
    %c0_i32 = arith.constant 0 : i32
    %c0_i32_0 = arith.constant 0 : i32
    %c0_i32_1 = arith.constant 0 : i32
    return %arg1, %c0_i32, %arg0, %c0_i32_0 : i32, i32, i32, i32
  }
}

</mosaic_0001>

<llo_original>
// kernel: tpu_custom_call.1
$region0: #{tpu_custom_call.1}
  #allocation0 [shape = 'u32[]', space=smem, size = 0x4, offset = 0x4, fixed_abs, tag = 'smem constant byte address 0x4 - core index']
  #allocation1 [shape = 'u32[144,128]{1,0:T(1,128)}', space=vmem, size = 0x12000, scoped, tag = 'internal scratch']
  #allocation2 [shape = 'f32[32,256]{1,0:T(8,128)}', space=vmem, size = 0x8000, scoped, tag = 'scratch operand']
  #allocation3 [shape = 's32[1]{0}', space=sflag, size = 0x4, scoped, tag = 'scoped memory for tpu_custom_call.1']
  #allocation4 [shape = 'u8[512]{0}', space=smem, size = 0x200, scoped, tag = 'prefetched SMEM operand 0']
  %s0 = inlined_call_operand.hbm [shape: s32[2], index: 0, kind: input, shape index: {}]
  %s1 = inlined_call_operand.hbm [shape: bf16[2,8,4,256], index: 1, kind: input, shape index: {}]
  %s2 = inlined_call_operand.hbm [shape: bf16[2,256,256], index: 2, kind: input, shape index: {}]
  %s3 = inlined_call_operand.hbm [shape: bf16[2,4,8,256], index: 3, kind: input, shape index: {}]
  %s4 = inlined_call_operand.hbm [shape: f32[2,4,4,256], index: 4, kind: output, shape index: {}]
  %s5 = sld [smem:[#allocation0]]
  $region57: #{tpu_custom_call.1} parent=0
    _
  %s7 = ssub.s32 1, %s5
  %s8 = scalar_select 0, %s7, %s5
  %10 = dma.hbm_to_smem %s0, 16, [#allocation4], [#allocation3]
  %11 = dma.done [#allocation3], 16
  %12 = sfence
  $region1: #{tpu_custom_call.1} parent=0
    #allocation5 [shape = 'u8[32768]{0}', space=vmem, size = 0x8000, scoped, tag = 'input window, operand 1']
    #allocation6 [shape = 's32[2]{0}', space=sflag, size = 0x8, scoped, tag = 'scoped memory for tpu_custom_call.1']
    #allocation7 [shape = 's32[2]{0}', space=sflag, size = 0x8, scoped, tag = 'scoped memory for tpu_custom_call.1']
    #allocation8 [shape = 'u8[262144]{0}', space=vmem, size = 0x40000, scoped, tag = 'input window, operand 2']
    #allocation9 [shape = 's32[2]{0}', space=sflag, size = 0x8, scoped, tag = 'scoped memory for tpu_custom_call.1']
    #allocation10 [shape = 'u8[32768]{0}', space=vmem, size = 0x8000, scoped, tag = 'input window, operand 3']
    #allocation11 [shape = 'u8[32768]{0}', space=vmem, size = 0x8000, scoped, tag = 'output window, operand 0']
    %13 = vsyncpa [#allocation6], 0
    %s14 = scalar_lea.sflag [#allocation6], 1
    %15 = vsyncpa %s14, 0
    %16 = vsyncpa [#allocation9], 0
    %s17 = scalar_lea.sflag [#allocation9], 1
    %18 = vsyncpa %s17, 0
    %19 = vsyncpa [#allocation7], 0
    %s20 = scalar_lea.sflag [#allocation7], 1
    %21 = vsyncpa %s20, 0
    loop: start=0, step=1, limit=4
    $region2: #{tpu_custom_call.1} parent=1 // loop_pre_header
      _
    $region3: #{tpu_custom_call.1} parent=1 // loop_header
      %s23 = sphi 0, %s27
      %p24 = scmp.ge.s32.totalorder %s23, 4
      %s30 = sphi 0, %s42
      %s31 = sphi 0, %s38
      %s32 = sphi 0, %s30
      %s33 = sphi 0, %s31
      %s34 = sphi 0, %s32
      %s35 = sphi 0, %s33
      %s49 = sphi 0, %s51
      %s52 = sphi 0, %s49
      %s53 = sphi 0, %s52
      %s69 = sphi 0, %s53
      %s75 = sphi 0, %s77
      %s78 = sphi 0, %s75
      %s79 = sphi 0, %s78
      %s95 = sphi 0, %s79
      %s101 = sphi 0, %s103
      %s104 = sphi 0, %s101
      %s105 = sphi 0, %s104
      %s121 = sphi 0, %s105
      %s129 = sphi 0, %s131
      %s132 = sphi 0, %s129
      %s133 = sphi 0, %s132
      %s149 = sphi 0, %s133
    $region4: #{tpu_custom_call.1} parent=1 // loop_header_branch
      %26 = sbr.rel (%p24) target = $region8
    $region5: #{tpu_custom_call.1} parent=1 // loop_body
      %s28 = ssub.s32 %s23, 1
      %s29 = ssub.s32 %s23, 2
      %s36 = sadd.s32 1, %s31
      %p37 = scmp.ge.s32.totalorder %s36, 2
      %s38 = scalar_select %p37, 0, %s36
      %s39 = sadd.s32 1, %s30
      %s40 = scalar_select %p37, %s39, %s30
      %p41 = scmp.ge.s32.totalorder %s40, 1
      %s42 = scalar_select %p41, 0, %s40
      %s43 = sld [smem:[#allocation4 + %s31]]
      %s44 = sld [smem:[#allocation4 + %s38]]
      %s45 = ssub.s32 %s43, %s44
      %s46 = ssub.s32 %s30, %s42
      %s47 = sor.u32 %s45, %s46
      %p48 = scmp.eq.s32.totalorder %s47, 0
      %s50 = sadd.s32 %s49, 1
      %s51 = scalar_select %p48, %s49, %s50
      %p54 = pneg %p48
      %p55 = scmp.eq.s32.totalorder %s23, 1
      %p56 = por %p54, %p55
      %p57 = scmp.ne.s32.totalorder %s49, %s52
      %p58 = scmp.eq.s32.totalorder %s23, 0
      %p59 = por %p57, %p58
      %p60 = scmp.ne.s32.totalorder %s49, %s52
      %p61 = scmp.eq.s32.totalorder %s28, 1
      %p62 = por %p60, %p61
      %p63 = scmp.ne.s32.totalorder %s52, %s53
      %p64 = scmp.eq.s32.totalorder %s28, 0
      %p65 = por %p63, %p64
      %p66 = scmp.ne.s32.totalorder %s52, %s53
      %p67 = scmp.eq.s32.totalorder %s29, 1
      %p68 = por %p66, %p67
      %p70 = scmp.ne.s32.totalorder %s53, %s69
      %p71 = scmp.eq.s32.totalorder %s29, 0
      %p72 = por %p70, %p71
      %s73 = ssub.s32 %s31, %s38
      %p74 = scmp.eq.s32.totalorder %s73, 0
      %s76 = sadd.s32 %s75, 1
      %s77 = scalar_select %p74, %s75, %s76
      %p80 = pneg %p74
      %p81 = scmp.eq.s32.totalorder %s23, 1
      %p82 = por %p80, %p81
      %p83 = scmp.ne.s32.totalorder %s75, %s78
      %p84 = scmp.eq.s32.totalorder %s23, 0
      %p85 = por %p83, %p84
      %p86 = scmp.ne.s32.totalorder %s75, %s78
      %p87 = scmp.eq.s32.totalorder %s28, 1
      %p88 = por %p86, %p87
      %p89 = scmp.ne.s32.totalorder %s78, %s79
      %p90 = scmp.eq.s32.totalorder %s28, 0
      %p91 = por %p89, %p90
      %p92 = scmp.ne.s32.totalorder %s78, %s79
      %p93 = scmp.eq.s32.totalorder %s29, 1
      %p94 = por %p92, %p93
      %p96 = scmp.ne.s32.totalorder %s79, %s95
      %p97 = scmp.eq.s32.totalorder %s29, 0
      %p98 = por %p96, %p97
      %s99 = ssub.s32 %s31, %s38
      %p100 = scmp.eq.s32.totalorder %s99, 0
      %s102 = sadd.s32 %s101, 1
      %s103 = scalar_select %p100, %s101, %s102
      %p106 = pneg %p100
      %p107 = scmp.eq.s32.totalorder %s23, 1
      %p108 = por %p106, %p107
      %p109 = scmp.ne.s32.totalorder %s101, %s104
      %p110 = scmp.eq.s32.totalorder %s23, 0
      %p111 = por %p109, %p110
      %p112 = scmp.ne.s32.totalorder %s101, %s104
      %p113 = scmp.eq.s32.totalorder %s28, 1
      %p114 = por %p112, %p113
      %p115 = scmp.ne.s32.totalorder %s104, %s105
      %p116 = scmp.eq.s32.totalorder %s28, 0
      %p117 = por %p115, %p116
      %p118 = scmp.ne.s32.totalorder %s104, %s105
      %p119 = scmp.eq.s32.totalorder %s29, 1
      %p120 = por %p118, %p119
      %p122 = scmp.ne.s32.totalorder %s105, %s121
      %p123 = scmp.eq.s32.totalorder %s29, 0
      %p124 = por %p122, %p123
      %s125 = ssub.s32 %s31, %s38
      %s126 = ssub.s32 %s30, %s42
      %s127 = sor.u32 %s125, %s126
      %p128 = scmp.eq.s32.totalorder %s127, 0
      %s130 = sadd.s32 %s129, 1
      %s131 = scalar_select %p128, %s129, %s130
      %p134 = pneg %p128
      %p135 = scmp.eq.s32.totalorder %s23, 1
      %p136 = por %p134, %p135
      %p137 = scmp.ne.s32.totalorder %s129, %s132
      %p138 = scmp.eq.s32.totalorder %s23, 0
      %p139 = por %p137, %p138
      %p140 = scmp.ne.s32.totalorder %s129, %s132
      %p141 = scmp.eq.s32.totalorder %s28, 1
      %p142 = por %p140, %p141
      %p143 = scmp.ne.s32.totalorder %s132, %s133
      %p144 = scmp.eq.s32.totalorder %s28, 0
      %p145 = por %p143, %p144
      %p146 = scmp.ne.s32.totalorder %s132, %s133
      %p147 = scmp.eq.s32.totalorder %s29, 1
      %p148 = por %p146, %p147
      %p150 = scmp.ne.s32.totalorder %s133, %s149
      %p151 = scmp.eq.s32.totalorder %s29, 0
      %p152 = por %p150, %p151
      %p153 = scmp.le.s32.totalorder 1, %s23
      %p154 = scmp.lt.s32.totalorder %s23, 3
      %p155 = pnand %p153, %p154
      %p156 = pneg %p155
      // Predicated region
      $region9: #{tpu_custom_call.1} parent=5 // pred_check
        _
      $region10: #{tpu_custom_call.1} parent=5 // pred_check_branch
        %158 = sbr.rel (%p155) target = $region12
      $region11: #{tpu_custom_call.1} parent=5 // pred_region
        %s159 = ssub.s32 %s23, 1
      $region12: #{tpu_custom_call.1} parent=5 // pred_fallthru
        _
      %p160 = scmp.lt.s32.totalorder %s23, 2
      // Predicated region
      $region13: #{tpu_custom_call.1} parent=5 // pred_check
        %p161 = pneg %p160
      $region14: #{tpu_custom_call.1} parent=5 // pred_check_branch
        %163 = sbr.rel (%p161) target = $region16
      $region15: #{tpu_custom_call.1} parent=5 // pred_region
        // Predicated region
        $region17: #{tpu_custom_call.1} parent=15 // pred_check
          %p164 = pneg %p59
        $region18: #{tpu_custom_call.1} parent=15 // pred_check_branch
          %166 = sbr.rel (%p164) target = $region20
        $region19: #{tpu_custom_call.1} parent=15 // pred_region
          %s167 = sand.u32 %s49, 1
          %s168 = scalar_lea.sflag [#allocation6], %s167
          %s169 = sand.u32 %s49, 1
          %s170 = smul.addr %s169, 32
          %s171 = scalar_lea.vmem [#allocation5], %s170
          %s172 = sld [smem:[#allocation4 + %s31]]
          %s174 = ssub.s32 512, 512
          %175 = vsyncadd %s168, %s174
          %s176 = smul.addr %s30, 2
          %s177 = smul.addr %s172, 16
          %s178 = sadd.s32 %s176, %s177
          %s179 = smul.addr %s178, 32
          %s180 = scalar_lea.hbm %s1, %s179
          %s181 = sshll.u32 %s171, 4
          %s182 = int_to_ptr.vmem [resolvable:$true] %s181
          %187 = dma.hbm_to_vmem [thread:$0]  %s180, 512, %s182, %s168, 64, 64, 4
        $region20: #{tpu_custom_call.1} parent=15 // pred_fallthru
          _
        // Predicated region
        $region21: #{tpu_custom_call.1} parent=15 // pred_check
          %p188 = pneg %p85
        $region22: #{tpu_custom_call.1} parent=15 // pred_check_branch
          %190 = sbr.rel (%p188) target = $region24
        $region23: #{tpu_custom_call.1} parent=15 // pred_region
          %s191 = sand.u32 %s23, 1
          %s192 = scalar_lea.sflag [#allocation9], %s191
          %s193 = sand.u32 %s75, 1
          %s194 = smul.addr %s193, 256
          %s195 = scalar_lea.vmem [#allocation8], %s194
          %s197 = ssub.s32 4096, 4096
          %198 = vsyncadd %s192, %s197
          %s199 = smul.addr %s31, 64
          %s200 = smul.addr %s199, 64
          %s201 = scalar_lea.hbm %s2, %s200
          %s202 = sshll.u32 %s195, 4
          %s203 = int_to_ptr.vmem [resolvable:$true] %s202
          %208 = dma.hbm_to_vmem [thread:$0]  %s201, 4096, %s203, %s192, 128, 128, 8
        $region24: #{tpu_custom_call.1} parent=15 // pred_fallthru
          _
        // Predicated region
        $region25: #{tpu_custom_call.1} parent=15 // pred_check
          %p209 = pneg %p111
        $region26: #{tpu_custom_call.1} parent=15 // pred_check_branch
          %211 = sbr.rel (%p209) target = $region28
        $region27: #{tpu_custom_call.1} parent=15 // pred_region
          %s212 = sand.u32 %s23, 1
          %s213 = scalar_lea.sflag [#allocation9], %s212
          %s214 = sand.u32 %s101, 1
          %s215 = smul.addr %s214, 32
          %s216 = scalar_lea.vmem [#allocation10], %s215
          %s218 = ssub.s32 512, 512
          %219 = vsyncadd %s213, %s218
          %s220 = smul.addr %s31, 8
          %s221 = smul.addr %s220, 64
          %s222 = scalar_lea.hbm %s3, %s221
          %s223 = sshll.u32 %s216, 4
          %s224 = int_to_ptr.vmem [resolvable:$true] %s223
          %229 = dma.hbm_to_vmem [thread:$0]  %s222, 512, %s224, %s213, 128, 128, 8
        $region28: #{tpu_custom_call.1} parent=15 // pred_fallthru
          _
      $region16: #{tpu_custom_call.1} parent=5 // pred_fallthru
        _
      %p230 = scmp.le.s32.totalorder 1, %s23
      %p231 = scmp.lt.s32.totalorder %s23, 3
      %p232 = pnand %p230, %p231
      %p233 = pneg %p232
      // Predicated region
      $region29: #{tpu_custom_call.1} parent=5 // pred_check
        _
      $region30: #{tpu_custom_call.1} parent=5 // pred_check_branch
        %235 = sbr.rel (%p232) target = $region32
      $region31: #{tpu_custom_call.1} parent=5 // pred_region
        %s236 = ssub.s32 %s23, 1
        %s237 = sand.u32 %s52, 1
        %s238 = scalar_lea.sflag [#allocation6], %s237
        %s239 = sand.u32 %s52, 1
        %s240 = smul.addr %s239, 32
        %s241 = scalar_lea.vmem [#allocation5], %s240
        // Predicated region
        $region33: #{tpu_custom_call.1} parent=31 // pred_check
          %p242 = pneg %p65
        $region34: #{tpu_custom_call.1} parent=31 // pred_check_branch
          %244 = sbr.rel (%p242) target = $region36
        $region35: #{tpu_custom_call.1} parent=31 // pred_region
          %245 = dma.done %s238, 512
        $region36: #{tpu_custom_call.1} parent=31 // pred_fallthru
          _
        %s246 = sand.u32 %s28, 1
        %s247 = scalar_lea.sflag [#allocation9], %s246
        %s248 = sand.u32 %s78, 1
        %s249 = smul.addr %s248, 256
        %s250 = scalar_lea.vmem [#allocation8], %s249
        // Predicated region
        $region37: #{tpu_custom_call.1} parent=31 // pred_check
          %p251 = pneg %p91
        $region38: #{tpu_custom_call.1} parent=31 // pred_check_branch
          %253 = sbr.rel (%p251) target = $region40
        $region39: #{tpu_custom_call.1} parent=31 // pred_region
          %254 = dma.done %s247, 4096
        $region40: #{tpu_custom_call.1} parent=31 // pred_fallthru
          _
        %s255 = sand.u32 %s28, 1
        %s256 = scalar_lea.sflag [#allocation9], %s255
        %s257 = sand.u32 %s104, 1
        %s258 = smul.addr %s257, 32
        %s259 = scalar_lea.vmem [#allocation10], %s258
        // Predicated region
        $region41: #{tpu_custom_call.1} parent=31 // pred_check
          %p260 = pneg %p117
        $region42: #{tpu_custom_call.1} parent=31 // pred_check_branch
          %262 = sbr.rel (%p260) target = $region44
        $region43: #{tpu_custom_call.1} parent=31 // pred_region
          %263 = dma.done %s256, 512
        $region44: #{tpu_custom_call.1} parent=31 // pred_fallthru
          _
        %s264 = sand.u32 %s52, 1
        %s265 = scalar_lea.sflag [#allocation6], %s264
        %s266 = sand.u32 %s52, 1
        %s267 = smul.addr %s266, 32
        %s268 = scalar_lea.vmem [#allocation5], %s267
        %p269 = pneg %p65
        %p270 = pneg %p62
        %s271 = sand.u32 %s28, 1
        %s272 = scalar_lea.sflag [#allocation9], %s271
        %s273 = sand.u32 %s78, 1
        %s274 = smul.addr %s273, 256
        %s275 = scalar_lea.vmem [#allocation8], %s274
        %p276 = pneg %p91
        %p277 = pneg %p88
        %s278 = sand.u32 %s28, 1
        %s279 = scalar_lea.sflag [#allocation9], %s278
        %s280 = sand.u32 %s104, 1
        %s281 = smul.addr %s280, 32
        %s282 = scalar_lea.vmem [#allocation10], %s281
        %p283 = pneg %p117
        %p284 = pneg %p114
        %p285 = pneg %p145
        %p286 = pneg %p142
        %s287 = sand.u32 %s132, 1
        %s288 = scalar_lea.sflag [#allocation7], %s287
        %s289 = sand.u32 %s132, 1
        %s290 = smul.addr %s289, 32
        %s291 = scalar_lea.vmem [#allocation11], %s290
        %s292 = sld [smem:[#allocation4 + %s33]]
        %v293 = vld [vmem:[%s241] sm:$0xf]
        %v294 = vld [vmem:[%s241 + $0x4] sm:$0xf]
        %v295 = vld [vmem:[%s241 + $0x8] sm:$0xf]
        %v296 = vld [vmem:[%s241 + $0xc] sm:$0xf]
        %v297 = vld [vmem:[%s241 + $0x10] sm:$0xf]
        %v298 = vld [vmem:[%s241 + $0x14] sm:$0xf]
        %v299 = vld [vmem:[%s241 + $0x18] sm:$0xf]
        %v300 = vld [vmem:[%s241 + $0x1c] sm:$0xf]
        %v301 = vld [vmem:[%s250] sm:$0xff]
        %v302 = vld [vmem:[%s250 + $0x8] sm:$0xff]
        %v303 = vld [vmem:[%s250 + $0x10] sm:$0xff]
        %v304 = vld [vmem:[%s250 + $0x18] sm:$0xff]
        %v305 = vld [vmem:[%s250 + $0x20] sm:$0xff]
        %v306 = vld [vmem:[%s250 + $0x28] sm:$0xff]
        %v307 = vld [vmem:[%s250 + $0x30] sm:$0xff]
        %v308 = vld [vmem:[%s250 + $0x38] sm:$0xff]
        %v309 = vld [vmem:[%s250 + $0x40] sm:$0xff]
        %v310 = vld [vmem:[%s250 + $0x48] sm:$0xff]
        %v311 = vld [vmem:[%s250 + $0x50] sm:$0xff]
        %v312 = vld [vmem:[%s250 + $0x58] sm:$0xff]
        %v313 = vld [vmem:[%s250 + $0x60] sm:$0xff]
        %v314 = vld [vmem:[%s250 + $0x68] sm:$0xff]
        %v315 = vld [vmem:[%s250 + $0x70] sm:$0xff]
        %v316 = vld [vmem:[%s250 + $0x78] sm:$0xff]
        %v317 = vld [vmem:[%s250 + $0x80] sm:$0xff]
        %v318 = vld [vmem:[%s250 + $0x88] sm:$0xff]
        %v319 = vld [vmem:[%s250 + $0x90] sm:$0xff]
        %v320 = vld [vmem:[%s250 + $0x98] sm:$0xff]
        %v321 = vld [vmem:[%s250 + $0xa0] sm:$0xff]
        %v322 = vld [vmem:[%s250 + $0xa8] sm:$0xff]
        %v323 = vld [vmem:[%s250 + $0xb0] sm:$0xff]
        %v324 = vld [vmem:[%s250 + $0xb8] sm:$0xff]
        %v325 = vld [vmem:[%s250 + $0xc0] sm:$0xff]
        %v326 = vld [vmem:[%s250 + $0xc8] sm:$0xff]
        %v327 = vld [vmem:[%s250 + $0xd0] sm:$0xff]
        %v328 = vld [vmem:[%s250 + $0xd8] sm:$0xff]
        %v329 = vld [vmem:[%s250 + $0xe0] sm:$0xff]
        %v330 = vld [vmem:[%s250 + $0xe8] sm:$0xff]
        %v331 = vld [vmem:[%s250 + $0xf0] sm:$0xff]
        %v332 = vld [vmem:[%s250 + $0xf8] sm:$0xff]
        %v341 = vcombine.low %v293, %v294
        %v342 = vcombine.low %v295, %v296
        %v344 = vunpack.c.l.s4 1983009808
        %v345 = vunpack.c.0.s8 %v344
        %v346 = vlaneseq
        %v347 = vshrl.u32 %v346, 7
        %v348 = vsub.s32 %v345, %v347
        %v349 = vrot.slane %v341, %v348
        %v351 = vunpack.c.l.s4 1983009808
        %v352 = vunpack.c.0.s8 %v351
        %v353 = vlaneseq
        %v354 = vshrl.u32 %v353, 7
        %v355 = vsub.s32 %v352, %v354
        %v356 = vrot.slane %v342, %v355
        %v357 = vcombine.low %v349, %v356
        %v358 = vcombine.high %v349, %v356
        %v359 = vcombine.low %v297, %v298
        %v360 = vcombine.low %v299, %v300
        %v362 = vunpack.c.l.s4 1983009808
        %v363 = vunpack.c.0.s8 %v362
        %v364 = vlaneseq
        %v365 = vshrl.u32 %v364, 7
        %v366 = vsub.s32 %v363, %v365
        %v367 = vrot.slane %v359, %v366
        %v369 = vunpack.c.l.s4 1983009808
        %v370 = vunpack.c.0.s8 %v369
        %v371 = vlaneseq
        %v372 = vshrl.u32 %v371, 7
        %v373 = vsub.s32 %v370, %v372
        %v374 = vrot.slane %v360, %v373
        %v375 = vcombine.low %v367, %v374
        %v376 = vcombine.high %v367, %v374
        %v413 = vunpack.c.l.b16 %v301
        %v414 = vunpack.c.h.b16 %v301
        %v415 = vunpack.c.l.b16 %v302
        %v416 = vunpack.c.h.b16 %v302
        %v417 = vunpack.c.l.b16 %v303
        %v418 = vunpack.c.h.b16 %v303
        %v419 = vunpack.c.l.b16 %v304
        %v420 = vunpack.c.h.b16 %v304
        %v421 = vunpack.c.l.b16 %v305
        %v422 = vunpack.c.h.b16 %v305
        %v423 = vunpack.c.l.b16 %v306
        %v424 = vunpack.c.h.b16 %v306
        %v425 = vunpack.c.l.b16 %v307
        %v426 = vunpack.c.h.b16 %v307
        %v427 = vunpack.c.l.b16 %v308
        %v428 = vunpack.c.h.b16 %v308
        %v429 = vunpack.c.l.b16 %v309
        %v430 = vunpack.c.h.b16 %v309
        %v431 = vunpack.c.l.b16 %v310
        %v432 = vunpack.c.h.b16 %v310
        %v433 = vunpack.c.l.b16 %v311
        %v434 = vunpack.c.h.b16 %v311
        %v435 = vunpack.c.l.b16 %v312
        %v436 = vunpack.c.h.b16 %v312
        %v437 = vunpack.c.l.b16 %v313
        %v438 = vunpack.c.h.b16 %v313
        %v439 = vunpack.c.l.b16 %v314
        %v440 = vunpack.c.h.b16 %v314
        %v441 = vunpack.c.l.b16 %v315
        %v442 = vunpack.c.h.b16 %v315
        %v443 = vunpack.c.l.b16 %v316
        %v444 = vunpack.c.h.b16 %v316
        %v445 = vunpack.c.l.b16 %v317
        %v446 = vunpack.c.h.b16 %v317
        %v447 = vunpack.c.l.b16 %v318
        %v448 = vunpack.c.h.b16 %v318
        %v449 = vunpack.c.l.b16 %v319
        %v450 = vunpack.c.h.b16 %v319
        %v451 = vunpack.c.l.b16 %v320
        %v452 = vunpack.c.h.b16 %v320
        %v453 = vunpack.c.l.b16 %v321
        %v454 = vunpack.c.h.b16 %v321
        %v455 = vunpack.c.l.b16 %v322
        %v456 = vunpack.c.h.b16 %v322
        %v457 = vunpack.c.l.b16 %v323
        %v458 = vunpack.c.h.b16 %v323
        %v459 = vunpack.c.l.b16 %v324
        %v460 = vunpack.c.h.b16 %v324
        %v461 = vunpack.c.l.b16 %v325
        %v462 = vunpack.c.h.b16 %v325
        %v463 = vunpack.c.l.b16 %v326
        %v464 = vunpack.c.h.b16 %v326
        %v465 = vunpack.c.l.b16 %v327
        %v466 = vunpack.c.h.b16 %v327
        %v467 = vunpack.c.l.b16 %v328
        %v468 = vunpack.c.h.b16 %v328
        %v469 = vunpack.c.l.b16 %v329
        %v470 = vunpack.c.h.b16 %v329
        %v471 = vunpack.c.l.b16 %v330
        %v472 = vunpack.c.h.b16 %v330
        %v473 = vunpack.c.l.b16 %v331
        %v474 = vunpack.c.h.b16 %v331
        %v475 = vunpack.c.l.b16 %v332
        %v476 = vunpack.c.h.b16 %v332
        %v477 = vpack.c.b16 %v415, %v413
        %v478 = vpack.c.b16 %v416, %v414
        %v479 = vpack.c.b16 %v419, %v417
        %v480 = vpack.c.b16 %v420, %v418
        %v481 = vpack.c.b16 %v423, %v421
        %v482 = vpack.c.b16 %v424, %v422
        %v483 = vpack.c.b16 %v427, %v425
        %v484 = vpack.c.b16 %v428, %v426
        %v485 = vpack.c.b16 %v431, %v429
        %v486 = vpack.c.b16 %v432, %v430
        %v487 = vpack.c.b16 %v435, %v433
        %v488 = vpack.c.b16 %v436, %v434
        %v489 = vpack.c.b16 %v439, %v437
        %v490 = vpack.c.b16 %v440, %v438
        %v491 = vpack.c.b16 %v443, %v441
        %v492 = vpack.c.b16 %v444, %v442
        %v493 = vpack.c.b16 %v447, %v445
        %v494 = vpack.c.b16 %v448, %v446
        %v495 = vpack.c.b16 %v451, %v449
        %v496 = vpack.c.b16 %v452, %v450
        %v497 = vpack.c.b16 %v455, %v453
        %v498 = vpack.c.b16 %v456, %v454
        %v499 = vpack.c.b16 %v459, %v457
        %v500 = vpack.c.b16 %v460, %v458
        %v501 = vpack.c.b16 %v463, %v461
        %v502 = vpack.c.b16 %v464, %v462
        %v503 = vpack.c.b16 %v467, %v465
        %v504 = vpack.c.b16 %v468, %v466
        %v505 = vpack.c.b16 %v471, %v469
        %v506 = vpack.c.b16 %v472, %v470
        %v507 = vpack.c.b16 %v475, %v473
        %v508 = vpack.c.b16 %v476, %v474
        %541 = vmatprep.subr.bf16.mxu0 %v492
        %542 = vmatpush1.bf16.msra.mxu0 %v491
        %543 = vmatprep.subr.bf16.mxu0 %v490
        %544 = vmatpush1.bf16.msra.mxu0 %v489
        %545 = vmatprep.subr.bf16.mxu0 %v488
        %546 = vmatpush1.bf16.msra.mxu0 %v487
        %547 = vmatprep.subr.bf16.mxu0 %v486
        %548 = vmatpush1.bf16.msra.mxu0 %v485
        %549 = vmatprep.subr.bf16.mxu0 %v484
        %550 = vmatpush1.bf16.msra.mxu0 %v483
        %551 = vmatprep.subr.bf16.mxu0 %v482
        %552 = vmatpush1.bf16.msra.mxu0 %v481
        %553 = vmatprep.subr.bf16.mxu0 %v480
        %554 = vmatpush1.bf16.msra.mxu0 %v479
        %555 = vmatprep.subr.bf16.mxu0 %v478
        %556 = vmatpush1.bf16.msra.mxu0 %v477
        %557 = vmatprep.subr.bf16.mxu0 %v508
        %558 = vmatpush2.bf16.msra.mxu0 %v507
        %559 = vmatprep.subr.bf16.mxu0 %v506
        %560 = vmatpush2.bf16.msra.mxu0 %v505
        %561 = vmatprep.subr.bf16.mxu0 %v504
        %562 = vmatpush2.bf16.msra.mxu0 %v503
        %563 = vmatprep.subr.bf16.mxu0 %v502
        %564 = vmatpush2.bf16.msra.mxu0 %v501
        %565 = vmatprep.subr.bf16.mxu0 %v500
        %566 = vmatpush2.bf16.msra.mxu0 %v499
        %567 = vmatprep.subr.bf16.mxu0 %v498
        %568 = vmatpush2.bf16.msra.mxu0 %v497
        %569 = vmatprep.subr.bf16.mxu0 %v496
        %570 = vmatpush2.bf16.msra.mxu0 %v495
        %571 = vmatprep.subr.bf16.mxu0 %v494
        %572 = vmatpush2.bf16.msra.mxu0 %v493
        %573 = vmatprep.mubr.bf16.mxu0 %v358
        %574 = vmatmul.mubr.bf16.gmra.mxu0 %v357
        %v575 = vpop.f32.mrf.mxu0
        %v576 = vadd.f32 0.0, %v575
        %v577 = vpop.f32.mrf.mxu0
        %v578 = vadd.f32 0.0, %v577
        %v579 = vpop.f32.mrf.mxu0
        %v580 = vadd.f32 0.0, %v579
        %v581 = vpop.f32.mrf.mxu0
        %v582 = vadd.f32 0.0, %v581
        %583 = vmatprep.mubr.bf16.mxu0 %v376
        %584 = vmatmul.mubr.bf16.gmra.mxu0 %v375
        %v585 = vpop.f32.mrf.mxu0
        %v586 = vadd.f32 0.0, %v585
        %v587 = vpop.f32.mrf.mxu0
        %v588 = vadd.f32 0.0, %v587
        %v589 = vpop.f32.mrf.mxu0
        %v590 = vadd.f32 0.0, %v589
        %v591 = vpop.f32.mrf.mxu0
        %v592 = vadd.f32 0.0, %v591
        %593 = vdwg.mxu0
        %594 = vst [vmem:[#allocation2] sm:$0xff] %v576
        %595 = vst [vmem:[#allocation2 + $0x8] sm:$0xff] %v578
        %596 = vst [vmem:[#allocation2 + $0x10] sm:$0xff] %v580
        %597 = vst [vmem:[#allocation2 + $0x18] sm:$0xff] %v582
        %598 = vst [vmem:[#allocation2 + $0x20] sm:$0xff] %v586
        %599 = vst [vmem:[#allocation2 + $0x28] sm:$0xff] %v588
        %600 = vst [vmem:[#allocation2 + $0x30] sm:$0xff] %v590
        %601 = vst [vmem:[#allocation2 + $0x38] sm:$0xff] %v592
        %v602 = vld [vmem:[%s259] sm:$0xff]
        %v603 = vld [vmem:[%s259 + $0x8] sm:$0xff]
        %v604 = vld [vmem:[%s259 + $0x10] sm:$0xff]
        %v605 = vld [vmem:[%s259 + $0x18] sm:$0xff]
        %v606 = vld [vmem:[#allocation2] sm:$0xf]
        %v607 = vld [vmem:[#allocation2 + $0x8] sm:$0xf]
        %v608 = vunpack.c.l.bf16 %v602
        %v609 = vunpack.c.h.bf16 %v602
        %v610 = vlaneseq
        %v611 = vshrl.u32 %v610, 7
        %v612 = vsub.s32 0, %v611
        %v613 = vrot.slane %v608, %v612
        %v614 = vlaneseq
        %v615 = vshrl.u32 %v614, 7
        %v616 = vsub.s32 0, %v615
        %v617 = vrot.slane %v609, %v616
        %v618 = vmul.f32 %v606, %v613
        %v619 = vmul.f32 %v607, %v617
        %v620 = vunpack.c.l.bf16 %v603
        %v621 = vunpack.c.h.bf16 %v603
        %v622 = vlaneseq
        %v623 = vshrl.u32 %v622, 7
        %v624 = vsub.s32 0, %v623
        %v625 = vrot.slane %v620, %v624
        %v626 = vlaneseq
        %v627 = vshrl.u32 %v626, 7
        %v628 = vsub.s32 0, %v627
        %v629 = vrot.slane %v621, %v628
        %v630 = vmul.f32 %v606, %v625
        %v631 = vmul.f32 %v607, %v629
        %v632 = vunpack.c.l.bf16 %v604
        %v633 = vunpack.c.h.bf16 %v604
        %v634 = vlaneseq
        %v635 = vshrl.u32 %v634, 7
        %v636 = vsub.s32 0, %v635
        %v637 = vrot.slane %v632, %v636
        %v638 = vlaneseq
        %v639 = vshrl.u32 %v638, 7
        %v640 = vsub.s32 0, %v639
        %v641 = vrot.slane %v633, %v640
        %v642 = vmul.f32 %v606, %v637
        %v643 = vmul.f32 %v607, %v641
        %v644 = vunpack.c.l.bf16 %v605
        %v645 = vunpack.c.h.bf16 %v605
        %v646 = vlaneseq
        %v647 = vshrl.u32 %v646, 7
        %v648 = vsub.s32 0, %v647
        %v649 = vrot.slane %v644, %v648
        %v650 = vlaneseq
        %v651 = vshrl.u32 %v650, 7
        %v652 = vsub.s32 0, %v651
        %v653 = vrot.slane %v645, %v652
        %v654 = vmul.f32 %v606, %v649
        %v655 = vmul.f32 %v607, %v653
        %v656 = vld [vmem:[#allocation2] sm:$0xf0]
        %v657 = vld [vmem:[#allocation2 + $0x8] sm:$0xf0]
        %v658 = vlaneseq
        %v659 = vshrl.u32 %v658, 7
        %v660 = vsub.s32 1, %v659
        %v661 = vrot.slane %v608, %v660
        %v662 = vlaneseq
        %v663 = vshrl.u32 %v662, 7
        %v664 = vsub.s32 1, %v663
        %v665 = vrot.slane %v609, %v664
        %v666 = vmul.f32 %v656, %v661
        %v667 = vmul.f32 %v657, %v665
        %v670 = vrot.slane %v666, 4
        %v671 = vrot.slane %v667, 4
        %v674 = vadd.f32 %v618, %v670
        %v675 = vadd.f32 %v619, %v671
        %v676 = vlaneseq
        %v677 = vshrl.u32 %v676, 7
        %v678 = vsub.s32 1, %v677
        %v679 = vrot.slane %v620, %v678
        %v680 = vlaneseq
        %v681 = vshrl.u32 %v680, 7
        %v682 = vsub.s32 1, %v681
        %v683 = vrot.slane %v621, %v682
        %v684 = vmul.f32 %v656, %v679
        %v685 = vmul.f32 %v657, %v683
        %v688 = vrot.slane %v684, 4
        %v689 = vrot.slane %v685, 4
        %v692 = vadd.f32 %v630, %v688
        %v693 = vadd.f32 %v631, %v689
        %v694 = vlaneseq
        %v695 = vshrl.u32 %v694, 7
        %v696 = vsub.s32 1, %v695
        %v697 = vrot.slane %v632, %v696
        %v698 = vlaneseq
        %v699 = vshrl.u32 %v698, 7
        %v700 = vsub.s32 1, %v699
        %v701 = vrot.slane %v633, %v700
        %v702 = vmul.f32 %v656, %v697
        %v703 = vmul.f32 %v657, %v701
        %v706 = vrot.slane %v702, 4
        %v707 = vrot.slane %v703, 4
        %v710 = vadd.f32 %v642, %v706
        %v711 = vadd.f32 %v643, %v707
        %v712 = vlaneseq
        %v713 = vshrl.u32 %v712, 7
        %v714 = vsub.s32 1, %v713
        %v715 = vrot.slane %v644, %v714
        %v716 = vlaneseq
        %v717 = vshrl.u32 %v716, 7
        %v718 = vsub.s32 1, %v717
        %v719 = vrot.slane %v645, %v718
        %v720 = vmul.f32 %v656, %v715
        %v721 = vmul.f32 %v657, %v719
        %v724 = vrot.slane %v720, 4
        %v725 = vrot.slane %v721, 4
        %v728 = vadd.f32 %v654, %v724
        %v729 = vadd.f32 %v655, %v725
        %v730 = vld [vmem:[#allocation2 + $0x10] sm:$0xf]
        %v731 = vld [vmem:[#allocation2 + $0x18] sm:$0xf]
        %v732 = vlaneseq
        %v733 = vshrl.u32 %v732, 7
        %v734 = vsub.s32 2, %v733
        %v735 = vrot.slane %v608, %v734
        %v736 = vlaneseq
        %v737 = vshrl.u32 %v736, 7
        %v738 = vsub.s32 2, %v737
        %v739 = vrot.slane %v609, %v738
        %v740 = vmul.f32 %v730, %v735
        %v741 = vmul.f32 %v731, %v739
        %v742 = vadd.f32 %v674, %v740
        %v743 = vadd.f32 %v675, %v741
        %v744 = vlaneseq
        %v745 = vshrl.u32 %v744, 7
        %v746 = vsub.s32 2, %v745
        %v747 = vrot.slane %v620, %v746
        %v748 = vlaneseq
        %v749 = vshrl.u32 %v748, 7
        %v750 = vsub.s32 2, %v749
        %v751 = vrot.slane %v621, %v750
        %v752 = vmul.f32 %v730, %v747
        %v753 = vmul.f32 %v731, %v751
        %v754 = vadd.f32 %v692, %v752
        %v755 = vadd.f32 %v693, %v753
        %v756 = vlaneseq
        %v757 = vshrl.u32 %v756, 7
        %v758 = vsub.s32 2, %v757
        %v759 = vrot.slane %v632, %v758
        %v760 = vlaneseq
        %v761 = vshrl.u32 %v760, 7
        %v762 = vsub.s32 2, %v761
        %v763 = vrot.slane %v633, %v762
        %v764 = vmul.f32 %v730, %v759
        %v765 = vmul.f32 %v731, %v763
        %v766 = vadd.f32 %v710, %v764
        %v767 = vadd.f32 %v711, %v765
        %v768 = vlaneseq
        %v769 = vshrl.u32 %v768, 7
        %v770 = vsub.s32 2, %v769
        %v771 = vrot.slane %v644, %v770
        %v772 = vlaneseq
        %v773 = vshrl.u32 %v772, 7
        %v774 = vsub.s32 2, %v773
        %v775 = vrot.slane %v645, %v774
        %v776 = vmul.f32 %v730, %v771
        %v777 = vmul.f32 %v731, %v775
        %v778 = vadd.f32 %v728, %v776
        %v779 = vadd.f32 %v729, %v777
        %v780 = vld [vmem:[#allocation2 + $0x10] sm:$0xf0]
        %v781 = vld [vmem:[#allocation2 + $0x18] sm:$0xf0]
        %v782 = vlaneseq
        %v783 = vshrl.u32 %v782, 7
        %v784 = vsub.s32 3, %v783
        %v785 = vrot.slane %v608, %v784
        %v786 = vlaneseq
        %v787 = vshrl.u32 %v786, 7
        %v788 = vsub.s32 3, %v787
        %v789 = vrot.slane %v609, %v788
        %v790 = vmul.f32 %v780, %v785
        %v791 = vmul.f32 %v781, %v789
        %v794 = vrot.slane %v790, 4
        %v795 = vrot.slane %v791, 4
        %v798 = vadd.f32 %v742, %v794
        %v799 = vadd.f32 %v743, %v795
        %v800 = vlaneseq
        %v801 = vshrl.u32 %v800, 7
        %v802 = vsub.s32 3, %v801
        %v803 = vrot.slane %v620, %v802
        %v804 = vlaneseq
        %v805 = vshrl.u32 %v804, 7
        %v806 = vsub.s32 3, %v805
        %v807 = vrot.slane %v621, %v806
        %v808 = vmul.f32 %v780, %v803
        %v809 = vmul.f32 %v781, %v807
        %v812 = vrot.slane %v808, 4
        %v813 = vrot.slane %v809, 4
        %v816 = vadd.f32 %v754, %v812
        %v817 = vadd.f32 %v755, %v813
        %v818 = vlaneseq
        %v819 = vshrl.u32 %v818, 7
        %v820 = vsub.s32 3, %v819
        %v821 = vrot.slane %v632, %v820
        %v822 = vlaneseq
        %v823 = vshrl.u32 %v822, 7
        %v824 = vsub.s32 3, %v823
        %v825 = vrot.slane %v633, %v824
        %v826 = vmul.f32 %v780, %v821
        %v827 = vmul.f32 %v781, %v825
        %v830 = vrot.slane %v826, 4
        %v831 = vrot.slane %v827, 4
        %v834 = vadd.f32 %v766, %v830
        %v835 = vadd.f32 %v767, %v831
        %v836 = vlaneseq
        %v837 = vshrl.u32 %v836, 7
        %v838 = vsub.s32 3, %v837
        %v839 = vrot.slane %v644, %v838
        %v840 = vlaneseq
        %v841 = vshrl.u32 %v840, 7
        %v842 = vsub.s32 3, %v841
        %v843 = vrot.slane %v645, %v842
        %v844 = vmul.f32 %v780, %v839
        %v845 = vmul.f32 %v781, %v843
        %v848 = vrot.slane %v844, 4
        %v849 = vrot.slane %v845, 4
        %v852 = vadd.f32 %v778, %v848
        %v853 = vadd.f32 %v779, %v849
        %v854 = vld [vmem:[#allocation2 + $0x20] sm:$0xf]
        %v855 = vld [vmem:[#allocation2 + $0x28] sm:$0xf]
        %v856 = vlaneseq
        %v857 = vshrl.u32 %v856, 7
        %v858 = vsub.s32 4, %v857
        %v859 = vrot.slane %v608, %v858
        %v860 = vlaneseq
        %v861 = vshrl.u32 %v860, 7
        %v862 = vsub.s32 4, %v861
        %v863 = vrot.slane %v609, %v862
        %v864 = vmul.f32 %v854, %v859
        %v865 = vmul.f32 %v855, %v863
        %v866 = vadd.f32 %v798, %v864
        %v867 = vadd.f32 %v799, %v865
        %v868 = vlaneseq
        %v869 = vshrl.u32 %v868, 7
        %v870 = vsub.s32 4, %v869
        %v871 = vrot.slane %v620, %v870
        %v872 = vlaneseq
        %v873 = vshrl.u32 %v872, 7
        %v874 = vsub.s32 4, %v873
        %v875 = vrot.slane %v621, %v874
        %v876 = vmul.f32 %v854, %v871
        %v877 = vmul.f32 %v855, %v875
        %v878 = vadd.f32 %v816, %v876
        %v879 = vadd.f32 %v817, %v877
        %v880 = vlaneseq
        %v881 = vshrl.u32 %v880, 7
        %v882 = vsub.s32 4, %v881
        %v883 = vrot.slane %v632, %v882
        %v884 = vlaneseq
        %v885 = vshrl.u32 %v884, 7
        %v886 = vsub.s32 4, %v885
        %v887 = vrot.slane %v633, %v886
        %v888 = vmul.f32 %v854, %v883
        %v889 = vmul.f32 %v855, %v887
        %v890 = vadd.f32 %v834, %v888
        %v891 = vadd.f32 %v835, %v889
        %v892 = vlaneseq
        %v893 = vshrl.u32 %v892, 7
        %v894 = vsub.s32 4, %v893
        %v895 = vrot.slane %v644, %v894
        %v896 = vlaneseq
        %v897 = vshrl.u32 %v896, 7
        %v898 = vsub.s32 4, %v897
        %v899 = vrot.slane %v645, %v898
        %v900 = vmul.f32 %v854, %v895
        %v901 = vmul.f32 %v855, %v899
        %v902 = vadd.f32 %v852, %v900
        %v903 = vadd.f32 %v853, %v901
        %v904 = vld [vmem:[#allocation2 + $0x20] sm:$0xf0]
        %v905 = vld [vmem:[#allocation2 + $0x28] sm:$0xf0]
        %v906 = vlaneseq
        %v907 = vshrl.u32 %v906, 7
        %v908 = vsub.s32 5, %v907
        %v909 = vrot.slane %v608, %v908
        %v910 = vlaneseq
        %v911 = vshrl.u32 %v910, 7
        %v912 = vsub.s32 5, %v911
        %v913 = vrot.slane %v609, %v912
        %v914 = vmul.f32 %v904, %v909
        %v915 = vmul.f32 %v905, %v913
        %v918 = vrot.slane %v914, 4
        %v919 = vrot.slane %v915, 4
        %v922 = vadd.f32 %v866, %v918
        %v923 = vadd.f32 %v867, %v919
        %v924 = vlaneseq
        %v925 = vshrl.u32 %v924, 7
        %v926 = vsub.s32 5, %v925
        %v927 = vrot.slane %v620, %v926
        %v928 = vlaneseq
        %v929 = vshrl.u32 %v928, 7
        %v930 = vsub.s32 5, %v929
        %v931 = vrot.slane %v621, %v930
        %v932 = vmul.f32 %v904, %v927
        %v933 = vmul.f32 %v905, %v931
        %v936 = vrot.slane %v932, 4
        %v937 = vrot.slane %v933, 4
        %v940 = vadd.f32 %v878, %v936
        %v941 = vadd.f32 %v879, %v937
        %v942 = vlaneseq
        %v943 = vshrl.u32 %v942, 7
        %v944 = vsub.s32 5, %v943
        %v945 = vrot.slane %v632, %v944
        %v946 = vlaneseq
        %v947 = vshrl.u32 %v946, 7
        %v948 = vsub.s32 5, %v947
        %v949 = vrot.slane %v633, %v948
        %v950 = vmul.f32 %v904, %v945
        %v951 = vmul.f32 %v905, %v949
        %v954 = vrot.slane %v950, 4
        %v955 = vrot.slane %v951, 4
        %v958 = vadd.f32 %v890, %v954
        %v959 = vadd.f32 %v891, %v955
        %v960 = vlaneseq
        %v961 = vshrl.u32 %v960, 7
        %v962 = vsub.s32 5, %v961
        %v963 = vrot.slane %v644, %v962
        %v964 = vlaneseq
        %v965 = vshrl.u32 %v964, 7
        %v966 = vsub.s32 5, %v965
        %v967 = vrot.slane %v645, %v966
        %v968 = vmul.f32 %v904, %v963
        %v969 = vmul.f32 %v905, %v967
        %v972 = vrot.slane %v968, 4
        %v973 = vrot.slane %v969, 4
        %v976 = vadd.f32 %v902, %v972
        %v977 = vadd.f32 %v903, %v973
        %v978 = vld [vmem:[#allocation2 + $0x30] sm:$0xf]
        %v979 = vld [vmem:[#allocation2 + $0x38] sm:$0xf]
        %v980 = vlaneseq
        %v981 = vshrl.u32 %v980, 7
        %v982 = vsub.s32 6, %v981
        %v983 = vrot.slane %v608, %v982
        %v984 = vlaneseq
        %v985 = vshrl.u32 %v984, 7
        %v986 = vsub.s32 6, %v985
        %v987 = vrot.slane %v609, %v986
        %v988 = vmul.f32 %v978, %v983
        %v989 = vmul.f32 %v979, %v987
        %v990 = vadd.f32 %v922, %v988
        %v991 = vadd.f32 %v923, %v989
        %v992 = vlaneseq
        %v993 = vshrl.u32 %v992, 7
        %v994 = vsub.s32 6, %v993
        %v995 = vrot.slane %v620, %v994
        %v996 = vlaneseq
        %v997 = vshrl.u32 %v996, 7
        %v998 = vsub.s32 6, %v997
        %v999 = vrot.slane %v621, %v998
        %v1000 = vmul.f32 %v978, %v995
        %v1001 = vmul.f32 %v979, %v999
        %v1002 = vadd.f32 %v940, %v1000
        %v1003 = vadd.f32 %v941, %v1001
        %v1004 = vlaneseq
        %v1005 = vshrl.u32 %v1004, 7
        %v1006 = vsub.s32 6, %v1005
        %v1007 = vrot.slane %v632, %v1006
        %v1008 = vlaneseq
        %v1009 = vshrl.u32 %v1008, 7
        %v1010 = vsub.s32 6, %v1009
        %v1011 = vrot.slane %v633, %v1010
        %v1012 = vmul.f32 %v978, %v1007
        %v1013 = vmul.f32 %v979, %v1011
        %v1014 = vadd.f32 %v958, %v1012
        %v1015 = vadd.f32 %v959, %v1013
        %v1016 = vlaneseq
        %v1017 = vshrl.u32 %v1016, 7
        %v1018 = vsub.s32 6, %v1017
        %v1019 = vrot.slane %v644, %v1018
        %v1020 = vlaneseq
        %v1021 = vshrl.u32 %v1020, 7
        %v1022 = vsub.s32 6, %v1021
        %v1023 = vrot.slane %v645, %v1022
        %v1024 = vmul.f32 %v978, %v1019
        %v1025 = vmul.f32 %v979, %v1023
        %v1026 = vadd.f32 %v976, %v1024
        %v1027 = vadd.f32 %v977, %v1025
        %v1028 = vld [vmem:[#allocation2 + $0x30] sm:$0xf0]
        %v1029 = vld [vmem:[#allocation2 + $0x38] sm:$0xf0]
        %v1030 = vlaneseq
        %v1031 = vshrl.u32 %v1030, 7
        %v1032 = vsub.s32 7, %v1031
        %v1033 = vrot.slane %v608, %v1032
        %v1034 = vlaneseq
        %v1035 = vshrl.u32 %v1034, 7
        %v1036 = vsub.s32 7, %v1035
        %v1037 = vrot.slane %v609, %v1036
        %v1038 = vmul.f32 %v1028, %v1033
        %v1039 = vmul.f32 %v1029, %v1037
        %v1042 = vrot.slane %v1038, 4
        %v1043 = vrot.slane %v1039, 4
        %v1046 = vadd.f32 %v990, %v1042
        %v1047 = vadd.f32 %v991, %v1043
        %v1048 = vlaneseq
        %v1049 = vshrl.u32 %v1048, 7
        %v1050 = vsub.s32 7, %v1049
        %v1051 = vrot.slane %v620, %v1050
        %v1052 = vlaneseq
        %v1053 = vshrl.u32 %v1052, 7
        %v1054 = vsub.s32 7, %v1053
        %v1055 = vrot.slane %v621, %v1054
        %v1056 = vmul.f32 %v1028, %v1051
        %v1057 = vmul.f32 %v1029, %v1055
        %v1060 = vrot.slane %v1056, 4
        %v1061 = vrot.slane %v1057, 4
        %v1064 = vadd.f32 %v1002, %v1060
        %v1065 = vadd.f32 %v1003, %v1061
        %v1066 = vlaneseq
        %v1067 = vshrl.u32 %v1066, 7
        %v1068 = vsub.s32 7, %v1067
        %v1069 = vrot.slane %v632, %v1068
        %v1070 = vlaneseq
        %v1071 = vshrl.u32 %v1070, 7
        %v1072 = vsub.s32 7, %v1071
        %v1073 = vrot.slane %v633, %v1072
        %v1074 = vmul.f32 %v1028, %v1069
        %v1075 = vmul.f32 %v1029, %v1073
        %v1078 = vrot.slane %v1074, 4
        %v1079 = vrot.slane %v1075, 4
        %v1082 = vadd.f32 %v1014, %v1078
        %v1083 = vadd.f32 %v1015, %v1079
        %v1084 = vlaneseq
        %v1085 = vshrl.u32 %v1084, 7
        %v1086 = vsub.s32 7, %v1085
        %v1087 = vrot.slane %v644, %v1086
        %v1088 = vlaneseq
        %v1089 = vshrl.u32 %v1088, 7
        %v1090 = vsub.s32 7, %v1089
        %v1091 = vrot.slane %v645, %v1090
        %v1092 = vmul.f32 %v1028, %v1087
        %v1093 = vmul.f32 %v1029, %v1091
        %v1096 = vrot.slane %v1092, 4
        %v1097 = vrot.slane %v1093, 4
        %v1100 = vadd.f32 %v1026, %v1096
        %v1101 = vadd.f32 %v1027, %v1097
        %v1104 = vcombine.low %v1046, %v1047
        %1106 = vst [vmem:[%s291] sm:$0xff] %v1104
        %v1109 = vcombine.low %v1064, %v1065
        %s1111 = scalar_lea.vmem %s291, 8 [#allocation11]
        %1112 = vst [vmem:[%s1111] sm:$0xff] %v1109
        %v1115 = vcombine.low %v1082, %v1083
        %s1117 = scalar_lea.vmem %s291, 16 [#allocation11]
        %1118 = vst [vmem:[%s1117] sm:$0xff] %v1115
        %v1121 = vcombine.low %v1100, %v1101
        %s1123 = scalar_lea.vmem %s291, 24 [#allocation11]
        %1124 = vst [vmem:[%s1123] sm:$0xff] %v1121
        %s1125 = sand.u32 %s132, 1
        %s1126 = scalar_lea.sflag [#allocation7], %s1125
        %s1127 = sand.u32 %s132, 1
        %s1128 = smul.addr %s1127, 32
        %s1129 = scalar_lea.vmem [#allocation11], %s1128
        // Predicated region
        $region45: #{tpu_custom_call.1} parent=31 // pred_check
          %p1130 = pneg %p142
        $region46: #{tpu_custom_call.1} parent=31 // pred_check_branch
          %1132 = sbr.rel (%p1130) target = $region48
        $region47: #{tpu_custom_call.1} parent=31 // pred_region
          %s1134 = ssub.s32 512, 512
          %1135 = vsyncadd %s1126, %s1134
          %s1136 = smul.addr %s32, 2
          %s1137 = smul.addr %s33, 8
          %s1138 = sadd.s32 %s1136, %s1137
          %s1139 = smul.addr %s1138, 64
          %s1140 = scalar_lea.hbm %s4, %s1139
          %s1141 = sshll.u32 %s1129, 4
          %s1142 = int_to_ptr.vmem [resolvable:$true] %s1141
          %1147 = dma.vmem_to_hbm [thread:$0]  %s1142, 512, %s1140, %s1126, 128, 128, 8
        $region48: #{tpu_custom_call.1} parent=31 // pred_fallthru
          _
      $region32: #{tpu_custom_call.1} parent=5 // pred_fallthru
        _
      %p1148 = scmp.le.s32.totalorder 2, %s23
      // Predicated region
      $region49: #{tpu_custom_call.1} parent=5 // pred_check
        %p1149 = pneg %p1148
      $region50: #{tpu_custom_call.1} parent=5 // pred_check_branch
        %1151 = sbr.rel (%p1149) target = $region52
      $region51: #{tpu_custom_call.1} parent=5 // pred_region
        %s1152 = ssub.s32 %s23, 2
        // Predicated region
        $region53: #{tpu_custom_call.1} parent=51 // pred_check
          %p1153 = pneg %p148
        $region54: #{tpu_custom_call.1} parent=51 // pred_check_branch
          %1155 = sbr.rel (%p1153) target = $region56
        $region55: #{tpu_custom_call.1} parent=51 // pred_region
          %s1156 = sand.u32 %s133, 1
          %s1157 = scalar_lea.sflag [#allocation7], %s1156
          %s1158 = sand.u32 %s133, 1
          %s1159 = smul.addr %s1158, 32
          %s1160 = scalar_lea.vmem [#allocation11], %s1159
          %1161 = dma.done %s1157, 512
        $region56: #{tpu_custom_call.1} parent=51 // pred_fallthru
          _
      $region52: #{tpu_custom_call.1} parent=5 // pred_fallthru
        _
    $region6: #{tpu_custom_call.1} parent=1 // loop_footer
      %s27 = sadd.s32 1, %s23
    $region7: #{tpu_custom_call.1} parent=1 // loop_footer_branch
      %22 = sbr.rel target = $region3
    $region8: #{tpu_custom_call.1} parent=1 // loop_exit
      _
    %1162 = vsyncpa [#allocation6], 1
    %s1163 = scalar_lea.sflag [#allocation6], 1
    %1164 = vsyncpa %s1163, 1
    %1165 = vsyncpa [#allocation9], 1
    %s1166 = scalar_lea.sflag [#allocation9], 1
    %1167 = vsyncpa %s1166, 1
    %1168 = vsyncpa [#allocation7], 1
    %s1169 = scalar_lea.sflag [#allocation7], 1
    %1170 = vsyncpa %s1169, 1

</llo_original>
